<compile_context>
chip_gen: v7x
topology: tpu7x:2x2x1
jax: 0.10.0
libtpu: 0.0.40
codegen_flags: <defaults>
</compile_context>

<pallas_src>
import math
import functools

import jax
import jax.numpy as jnp
from jax import lax
from jax.experimental import pallas as pl
from jax.experimental.pallas import tpu as pltpu


# ---------------------------------------------------------------------------
# Small capability / config helpers
# ---------------------------------------------------------------------------
def _supports_pipeline_mode():
    if not hasattr(pl, "Buffered"):
        return False
    try:
        pl.BlockSpec((8, 128), lambda i, j: (0, 0), pipeline_mode=pl.Buffered(2))
        return True
    except TypeError:
        return False


_PIPELINE_MODE_OK = _supports_pipeline_mode()


def _spec(shape, index_map, buffers=None):
    """BlockSpec with an optional buffering hint (graceful fallback to default)."""
    if buffers is not None and _PIPELINE_MODE_OK:
        return pl.BlockSpec(shape, index_map, pipeline_mode=pl.Buffered(buffers))
    return pl.BlockSpec(shape, index_map)


def _vmem_capacity_bytes():
    try:
        return int(pltpu.get_tpu_info().vmem_capacity_bytes)
    except Exception:
        return 64 << 20          # conservative: v7x physical VMEM


def _default_exp_dtype():
    # bf16 exp only where the EUP has a bf16 path (v6e / v7x); f32 elsewhere (v5e etc.).
    try:
        kind = jax.devices()[0].device_kind.lower()
    except Exception:
        return jnp.float32
    if "v6" in kind or "v7" in kind or "trillium" in kind:
        return jnp.bfloat16
    return jnp.float32


def _pick_tile(total, target, multiple):
    """Largest tile <= target dividing `total`, preferring `multiple`-aligned sizes."""
    if total <= target:
        return total
    for mult in (multiple, 8, 1):
        t = (min(target, total) // mult) * mult
        while t >= mult:
            if total % t == 0:
                return t
            t -= mult
    return total


def _ff_chunk(d_ff, target=512):
    """Largest multiple-of-128 chunk <= target that divides d_ff (else whole d_ff)."""
    if d_ff <= target:
        return d_ff
    c = (target // 128) * 128
    while c >= 128:
        if d_ff % c == 0:
            return c
        c -= 128
    return d_ff


# ---------------------------------------------------------------------------
# Pallas kernel: one fused EncoderLayer step for (batch b, q-tile, kv-tile)
# ---------------------------------------------------------------------------
def encoder_layer_kernel(
    x_ref, k_ref, v_ref,                               # (TQ, D) f32, (TK, D) bf16, (TK, D) bf16
    wq_ref, bq_ref, wo_ref, bo_ref,                    # (D, D) bf16, (1, D) f32
    g1_ref, bt1_ref,                                   # LayerNorm 1 (1, D)
    w1_ref, b1_ref, w2_ref, b2_ref,                    # FFN (D, Dff)/(1, Dff)/(Dff, D)/(1, D)
    g2_ref, bt2_ref,                                   # LayerNorm 2 (1, D)
    o_ref,                                             # (TQ, D) output
    q_sc, m_sc, l_sc, acc_sc,                          # scratch
    *, num_heads, head_dim, ff_chunk, compute_dtype, exp_dtype,
):
    ki = pl.program_id(2)
    nk = pl.num_programs(2)
    cd = compute_dtype
    scale = 1.0 / math.sqrt(head_dim)

    # ---- new (b, q-tile): full-width Q projection (scale folded) + flash-state reset ----
    @pl.when(ki == 0)
    def _init():
        xq = x_ref[...].astype(cd)
        q = lax.dot_general(xq, wq_ref[...], (((1,), (0,)), ((), ())),
                            preferred_element_type=jnp.float32)
        q = (q + bq_ref[...]) * scale
        q_sc[...] = q.astype(q_sc.dtype)
        m_sc[...] = jnp.full_like(m_sc, -jnp.inf)
        l_sc[...] = jnp.zeros_like(l_sc)
        acc_sc[...] = jnp.zeros_like(acc_sc)

    q = q_sc[...]            # (TQ, D)  head-major columns
    k = k_ref[...]           # (TK, D)  pre-projected K (bf16)
    v = v_ref[...]           # (TK, D)  pre-projected V (bf16)

    # ---- all heads for this kv tile (static unroll; per-head online softmax) ----
    for h in range(num_heads):
        c0, c1 = h * head_dim, (h + 1) * head_dim
        s = lax.dot_general(q[:, c0:c1], k[:, c0:c1],
                            (((1,), (1,)), ((), ())),
                            preferred_element_type=jnp.float32)          # (TQ, TK)
        m_prev = m_sc[:, h:h + 1]
        m_new = jnp.maximum(m_prev, jnp.max(s, axis=-1, keepdims=True))
        alpha = jnp.exp(m_prev - m_new)
        p = jnp.exp((s - m_new).astype(exp_dtype))                       # bf16 exp on v6e/v7x
        l_sc[:, h:h + 1] = alpha * l_sc[:, h:h + 1] + \
            jnp.sum(p.astype(jnp.float32), axis=-1, keepdims=True)
        pv = lax.dot_general(p.astype(cd), v[:, c0:c1],
                             (((1,), (0,)), ((), ())),
                             preferred_element_type=jnp.float32)         # (TQ, dk)
        acc_sc[:, c0:c1] = alpha * acc_sc[:, c0:c1] + pv
        m_sc[:, h:h + 1] = m_new

    # ---- last kv tile: normalize, ONE output projection, residual+LN1, FFN, residual+LN2 ----
    @pl.when(ki == nk - 1)
    def _finalize():
        for h in range(num_heads):   # per-head 1/l; columns stay head-major, VMEM-local writes
            c0, c1 = h * head_dim, (h + 1) * head_dim
            acc_sc[:, c0:c1] = acc_sc[:, c0:c1] * pl.reciprocal(l_sc[:, h:h + 1], approx=True)
        attn = acc_sc[...].astype(cd)                                    # (TQ, D)
        attn_out = lax.dot_general(attn, wo_ref[...], (((1,), (0,)), ((), ())),
                                   preferred_element_type=jnp.float32) + bo_ref[...]

        y = x_ref[...].astype(jnp.float32) + attn_out                    # residual 1
        mu = jnp.mean(y, axis=-1, keepdims=True)
        var = jnp.mean(jnp.square(y - mu), axis=-1, keepdims=True)
        y = (y - mu) * lax.rsqrt(var + 1e-5) * g1_ref[...] + bt1_ref[...]

        # FFN tiled over d_ff chunks: bounds the live (TQ, d_ff) intermediate.
        y_cd = y.astype(cd)
        ff = jnp.zeros_like(y)
        d_ff = w1_ref.shape[1]
        for c0 in range(0, d_ff, ff_chunk):
            c1 = c0 + ff_chunk
            h1 = lax.dot_general(y_cd, w1_ref[:, c0:c1], (((1,), (0,)), ((), ())),
                                 preferred_element_type=jnp.float32) + b1_ref[:, c0:c1]
            h1 = jnp.maximum(h1, 0.0).astype(cd)
            ff = ff + lax.dot_general(h1, w2_ref[c0:c1, :], (((1,), (0,)), ((), ())),
                                      preferred_element_type=jnp.float32)

        z = y + ff + b2_ref[...]                                         # residual 2
        mu2 = jnp.mean(z, axis=-1, keepdims=True)
        var2 = jnp.mean(jnp.square(z - mu2), axis=-1, keepdims=True)
        z = (z - mu2) * lax.rsqrt(var2 + 1e-5) * g2_ref[...] + bt2_ref[...]
        o_ref[...] = z.astype(o_ref.dtype)


# ---------------------------------------------------------------------------
# Wrapper for one EncoderLayer
# ---------------------------------------------------------------------------
def encoder_layer_forward(x, p, num_heads, *, tq=None, tk=None,
                          compute_dtype=jnp.bfloat16, exp_dtype=None):
    B, S, D = x.shape
    H = num_heads
    assert D % H == 0
    dk = D // H
    Dff = p["w1"].shape[1]

    if exp_dtype is None:
        exp_dtype = _default_exp_dtype()

    # Lane-dense kv tiles (TK multiple of 128), sublane-aligned q tiles (TQ multiple of 8).
    TQ = tq if tq is not None else _pick_tile(S, 256, 8)
    TK = tk if tk is not None else _pick_tile(S, 512, 128)
    if tq is None:
        # keep both v7x TensorCores busy: want at least 2 parallel (b, q-tile) work units
        while B * (S // TQ) < 2 and TQ > 8 and TQ % 16 == 0 and S % (TQ // 2) == 0:
            TQ //= 2
    assert S % TQ == 0 and S % TK == 0, "sequence tiles must divide S"
    assert (TQ % 8 == 0 or TQ == S) and (TK % 8 == 0 or TK == S)
    nq, nk = S // TQ, S // TK
    grid = (B, nq, nk)

    ffc = _ff_chunk(Dff)
    assert Dff % ffc == 0

    # K/V projections hoisted out of the kernel: one plain XLA matmul per layer (MXU),
    # streamed into the kernel as bf16 kv tiles (half the bytes of re-reading f32 x).
    x_cd = x.astype(compute_dtype)
    k = (jnp.dot(x_cd, p["wk"], preferred_element_type=jnp.float32) + p["bk"]).astype(compute_dtype)
    v = (jnp.dot(x_cd, p["wv"], preferred_element_type=jnp.float32) + p["bv"]).astype(compute_dtype)

    itemsize = jnp.dtype(compute_dtype).itemsize
    weight_bytes = (2 * D * D + 2 * D * Dff) * itemsize
    # Single-buffer constant-index weight blocks once they actually cost VMEM; 3-deep
    # kv buffering once there are enough kv tiles for it to hide DMA behind compute.
    w_buffers = 1 if (_PIPELINE_MODE_OK and weight_bytes > (4 << 20)) else None
    kv_buffers = 3 if (_PIPELINE_MODE_OK and nk >= 3) else None

    def wspec(arr):
        return _spec(arr.shape, lambda b, qi, ki: (0, 0), buffers=w_buffers)

    in_specs = [
        _spec((None, TQ, D), lambda b, qi, ki: (b, qi, 0)),                     # x (residual / Q)
        _spec((None, TK, D), lambda b, qi, ki: (b, ki, 0), buffers=kv_buffers),  # K tiles
        _spec((None, TK, D), lambda b, qi, ki: (b, ki, 0), buffers=kv_buffers),  # V tiles
        wspec(p["wq"]), wspec(p["bq"]),
        wspec(p["wo"]), wspec(p["bo"]),
        wspec(p["ln1_g"]), wspec(p["ln1_b"]),
        wspec(p["w1"]), wspec(p["b1"]),
        wspec(p["w2"]), wspec(p["b2"]),
        wspec(p["ln2_g"]), wspec(p["ln2_b"]),
    ]
    out_spec = pl.BlockSpec((None, TQ, D), lambda b, qi, ki: (b, qi, 0))

    scratch_shapes = [
        pltpu.VMEM((TQ, D), compute_dtype),   # scaled Q (head-major columns)
        pltpu.VMEM((TQ, H), jnp.float32),     # per-head running max m
        pltpu.VMEM((TQ, H), jnp.float32),     # per-head running sum l
        pltpu.VMEM((TQ, D), jnp.float32),     # attention numerator (head-major columns)
    ]

    # Generation-aware scoped-VMEM budget sized from the actual tiles.
    w_buf = 1 if w_buffers == 1 else 2
    kv_buf = kv_buffers if kv_buffers is not None else 2
    est = (
        2 * TQ * D * 4 + 2 * TQ * D * 4                 # x tile + output tile (f32, 2-buffered)
        + kv_buf * 2 * TK * D * itemsize                # K and V tiles
        + w_buf * weight_bytes                          # wq, wo, w1, w2
        + w_buf * (6 * D + Dff) * 4                     # biases + LayerNorm params
        + TQ * D * itemsize + TQ * D * 4                # q_sc + acc_sc
        + 2 * TQ * 128 * 4                              # m/l stats (lane-padded)
    )
    vmem_cap = _vmem_capacity_bytes()
    vmem_limit = int(min(max(1.4 * est + (2 << 20), 32 << 20), int(0.80 * vmem_cap)))

    kernel = functools.partial(
        encoder_layer_kernel, num_heads=H, head_dim=dk, ff_chunk=ffc,
        compute_dtype=compute_dtype, exp_dtype=exp_dtype)

    return pl.pallas_call(
        kernel,
        out_shape=jax.ShapeDtypeStruct((B, S, D), jnp.float32),
        grid=grid,
        in_specs=in_specs,
        out_specs=out_spec,
        scratch_shapes=scratch_shapes,
        compiler_params=pltpu.CompilerParams(
            dimension_semantics=("parallel", "parallel", "arbitrary"),
            vmem_limit_bytes=vmem_limit,
        ),
    )(x, k, v,
      p["wq"], p["bq"], p["wo"], p["bo"],
      p["ln1_g"], p["ln1_b"],
      p["w1"], p["b1"], p["w2"], p["b2"],
      p["ln2_g"], p["ln2_b"])


# ---------------------------------------------------------------------------
# Parameter init (deterministic, synthetic) and glue ops
# ---------------------------------------------------------------------------
def sinusoidal_pe(max_len, d_model):
    pos = jnp.arange(max_len, dtype=jnp.float32)[:, None]
    div = jnp.exp(
        jnp.arange(0, d_model, 2, dtype=jnp.float32) * (-math.log(10000.0) / d_model)
    )
    pe = jnp.zeros((max_len, d_model), jnp.float32)
    pe = pe.at[:, 0::2].set(jnp.sin(pos * div))
    pe = pe.at[:, 1::2].set(jnp.cos(pos * div))
    return pe


def init_params(key, vocab_size, d_model, d_ff, num_layers, max_len, num_heads,
                compute_dtype=jnp.bfloat16):
    assert d_model % num_heads == 0
    keys = jax.random.split(key, 1 + num_layers)
    emb = jax.random.normal(keys[0], (vocab_size, d_model), jnp.float32) * 0.02

    def linear(k, fan_in, fan_out):
        kw, kb = jax.random.split(k)
        w = jax.random.normal(kw, (fan_in, fan_out), jnp.float32) / math.sqrt(fan_in)
        b = jax.random.normal(kb, (1, fan_out), jnp.float32) * 0.02
        return w, b

    layers = []
    for l in range(num_layers):
        ks = jax.random.split(keys[1 + l], 6)
        wq, bq = linear(ks[0], d_model, d_model)
        wk, bk = linear(ks[1], d_model, d_model)
        wv, bv = linear(ks[2], d_model, d_model)
        wo, bo = linear(ks[3], d_model, d_model)
        w1, b1 = linear(ks[4], d_model, d_ff)
        w2, b2 = linear(ks[5], d_ff, d_model)

        # Q/K/V column order is already head-major (torch .view(B,S,H,dk) semantics),
        # so in-kernel column slices [:, h*dk:(h+1)*dk] pick head h directly, and the
        # head-major attention slab feeds wo as-is (no relayout anywhere).
        layers.append(dict(
            wq=wq.astype(compute_dtype), bq=bq,
            wk=wk.astype(compute_dtype), bk=bk,
            wv=wv.astype(compute_dtype), bv=bv,
            wo=wo.astype(compute_dtype), bo=bo,
            ln1_g=jnp.ones((1, d_model), jnp.float32),
            ln1_b=jnp.zeros((1, d_model), jnp.float32),
            w1=w1.astype(compute_dtype), b1=b1,
            w2=w2.astype(compute_dtype), b2=b2,
            ln2_g=jnp.ones((1, d_model), jnp.float32),
            ln2_b=jnp.zeros((1, d_model), jnp.float32),
        ))

    return dict(emb=emb, pe=sinusoidal_pe(max_len, d_model), layers=layers)


def encoder_forward(src, params, num_heads, *, tq=None, tk=None):
    """src: int32 [B, S] token ids -> float32 [B, S, d_model]."""
    d_model = params["emb"].shape[1]
    # TokenEmbedding (lookup * sqrt(d_model)) + PositionalEncoding: plain-JAX glue.
    x = params["emb"][src] * math.sqrt(d_model)
    x = x + params["pe"][None, : src.shape[1], :]
    # Dropout is identity in eval mode.
    for lp in params["layers"]:
        x = encoder_layer_forward(x, lp, num_heads, tq=tq, tk=tk)
    return x


# ---------------------------------------------------------------------------
if __name__ == "__main__":
    vocab_size = 50
    d_model = 128       # lane-dense residual/output slab (multiple of 128)
    num_heads = 4       # dk = 32
    d_ff = 256
    num_layers = 2
    max_len = 64
    B, S = 2, 32
    tq, tk = 16, 16     # small tiles so multi-q-tile and multi-kv-tile flash paths run

    key = jax.random.PRNGKey(0)
    pkey, skey = jax.random.split(key)

    params = init_params(pkey, vocab_size, d_model, d_ff, num_layers, max_len, num_heads)
    src = jax.random.randint(skey, (B, S), 0, vocab_size, dtype=jnp.int32)

    out = encoder_forward(src, params, num_heads, tq=tq, tk=tk)
    out = jax.block_until_ready(out)

    assert out.shape == (B, S, d_model)
    assert bool(jnp.all(jnp.isfinite(out)))
    print("KERNEL_OK")
</pallas_src>

<mosaic_0001>
module attributes {stable_mosaic.version = 11 : i64} {
  func.func @encoder_layer_kernel(%arg0: i32, %arg1: i32, %arg2: i32, %arg3: memref<1x16x128xf32, #tpu.memory_space<vmem>>, %arg4: memref<1x16x128xbf16, #tpu.memory_space<vmem>>, %arg5: memref<1x16x128xbf16, #tpu.memory_space<vmem>>, %arg6: memref<128x128xbf16, #tpu.memory_space<vmem>>, %arg7: memref<1x128xf32, #tpu.memory_space<vmem>>, %arg8: memref<128x128xbf16, #tpu.memory_space<vmem>>, %arg9: memref<1x128xf32, #tpu.memory_space<vmem>>, %arg10: memref<1x128xf32, #tpu.memory_space<vmem>>, %arg11: memref<1x128xf32, #tpu.memory_space<vmem>>, %arg12: memref<128x256xbf16, #tpu.memory_space<vmem>>, %arg13: memref<1x256xf32, #tpu.memory_space<vmem>>, %arg14: memref<256x128xbf16, #tpu.memory_space<vmem>>, %arg15: memref<1x128xf32, #tpu.memory_space<vmem>>, %arg16: memref<1x128xf32, #tpu.memory_space<vmem>>, %arg17: memref<1x128xf32, #tpu.memory_space<vmem>>, %arg18: memref<1x16x128xf32, #tpu.memory_space<vmem>>, %arg19: memref<16x128xbf16, #tpu.memory_space<vmem>>, %arg20: memref<16x4xf32, #tpu.memory_space<vmem>>, %arg21: memref<16x4xf32, #tpu.memory_space<vmem>>, %arg22: memref<16x128xf32, #tpu.memory_space<vmem>>) attributes {dimension_semantics = [#tpu.dimension_semantics<parallel>, #tpu.dimension_semantics<parallel>, #tpu.dimension_semantics<arbitrary>], iteration_bounds = array<i64: 2, 2, 2>, scalar_prefetch = 0 : i64, scratch_operands = 4 : i64, tpu.core_type = #tpu.core_type<tc>, window_params = [{transform_indices = @transform_0, window_bounds = array<i64: 1, 16, 128>}, {transform_indices = @transform_1, window_bounds = array<i64: 1, 16, 128>}, {transform_indices = @transform_2, window_bounds = array<i64: 1, 16, 128>}, {pipeline_mode = #tpu.pipeline_mode<synchronous>, transform_indices = @transform_3, window_bounds = array<i64: 128, 128>}, {pipeline_mode = #tpu.pipeline_mode<synchronous>, transform_indices = @transform_4, window_bounds = array<i64: 1, 128>}, {pipeline_mode = #tpu.pipeline_mode<synchronous>, transform_indices = @transform_5, window_bounds = array<i64: 128, 128>}, {pipeline_mode = #tpu.pipeline_mode<synchronous>, transform_indices = @transform_6, window_bounds = array<i64: 1, 128>}, {pipeline_mode = #tpu.pipeline_mode<synchronous>, transform_indices = @transform_7, window_bounds = array<i64: 1, 128>}, {pipeline_mode = #tpu.pipeline_mode<synchronous>, transform_indices = @transform_8, window_bounds = array<i64: 1, 128>}, {pipeline_mode = #tpu.pipeline_mode<synchronous>, transform_indices = @transform_9, window_bounds = array<i64: 128, 256>}, {pipeline_mode = #tpu.pipeline_mode<synchronous>, transform_indices = @transform_10, window_bounds = array<i64: 1, 256>}, {pipeline_mode = #tpu.pipeline_mode<synchronous>, transform_indices = @transform_11, window_bounds = array<i64: 256, 128>}, {pipeline_mode = #tpu.pipeline_mode<synchronous>, transform_indices = @transform_12, window_bounds = array<i64: 1, 128>}, {pipeline_mode = #tpu.pipeline_mode<synchronous>, transform_indices = @transform_13, window_bounds = array<i64: 1, 128>}, {pipeline_mode = #tpu.pipeline_mode<synchronous>, transform_indices = @transform_14, window_bounds = array<i64: 1, 128>}, {transform_indices = @transform_15, window_bounds = array<i64: 1, 16, 128>}]} {
    %c0_i32 = arith.constant 0 : i32
    %0 = arith.cmpi eq, %arg2, %c0_i32 : i32
    %1 = arith.extui %0 : i1 to i32
    %c0_i32_0 = arith.constant 0 : i32
    %2 = arith.cmpi ne, %1, %c0_i32_0 : i32
    scf.if %2 {
      %c0_66 = arith.constant 0 : index
      %c0_67 = arith.constant 0 : index
      %c0_68 = arith.constant 0 : index
      %119 = vector.load %arg3[%c0_66, %c0_67, %c0_68] : memref<1x16x128xf32, #tpu.memory_space<vmem>>, vector<1x16x128xf32>
      %120 = vector.shape_cast %119 : vector<1x16x128xf32> to vector<16x128xf32>
      %121 = arith.truncf %120 : vector<16x128xf32> to vector<16x128xbf16>
      %c0_69 = arith.constant 0 : index
      %c0_70 = arith.constant 0 : index
      %122 = vector.load %arg6[%c0_69, %c0_70] : memref<128x128xbf16, #tpu.memory_space<vmem>>, vector<128x128xbf16>
      %cst_71 = arith.constant dense<0.000000e+00> : vector<16x128xf32>
      %123 = tpu.matmul %121, %122, %cst_71 {dimension_numbers = #tpu.dot_dimension_numbers<[1], [0], [0], [1], [0, 0, 1, 1], [], []>} : vector<16x128xbf16>, vector<128x128xbf16>, vector<16x128xf32> -> vector<16x128xf32>
      %c0_72 = arith.constant 0 : index
      %c0_73 = arith.constant 0 : index
      %124 = vector.load %arg7[%c0_72, %c0_73] : memref<1x128xf32, #tpu.memory_space<vmem>>, vector<1x128xf32>
      %125 = vector.broadcast %124 : vector<1x128xf32> to vector<16x128xf32>
      %126 = arith.addf %123, %125 : vector<16x128xf32>
      %cst_74 = arith.constant 0.176776692 : f32
      %127 = vector.broadcast %cst_74 : f32 to vector<16x128xf32>
      %128 = arith.mulf %126, %127 : vector<16x128xf32>
      %129 = arith.truncf %128 : vector<16x128xf32> to vector<16x128xbf16>
      %c0_75 = arith.constant 0 : index
      %c0_76 = arith.constant 0 : index
      %130 = vector.load %arg19[%c0_75, %c0_76] : memref<16x128xbf16, #tpu.memory_space<vmem>>, vector<16x128xbf16>
      tpu.vector_store %arg19[%c0_75, %c0_76], %129 {strides = array<i32>} : memref<16x128xbf16, #tpu.memory_space<vmem>>, vector<16x128xbf16>,
      %cst_77 = arith.constant 0xFF800000 : f32
      %131 = vector.broadcast %cst_77 : f32 to vector<16x4xf32>
      %c0_78 = arith.constant 0 : index
      %c0_79 = arith.constant 0 : index
      %132 = vector.load %arg20[%c0_78, %c0_79] : memref<16x4xf32, #tpu.memory_space<vmem>>, vector<16x4xf32>
      tpu.vector_store %arg20[%c0_78, %c0_79], %131 {strides = array<i32>} : memref<16x4xf32, #tpu.memory_space<vmem>>, vector<16x4xf32>,
      %cst_80 = arith.constant 0.000000e+00 : f32
      %133 = vector.broadcast %cst_80 : f32 to vector<16x4xf32>
      %c0_81 = arith.constant 0 : index
      %c0_82 = arith.constant 0 : index
      %134 = vector.load %arg21[%c0_81, %c0_82] : memref<16x4xf32, #tpu.memory_space<vmem>>, vector<16x4xf32>
      tpu.vector_store %arg21[%c0_81, %c0_82], %133 {strides = array<i32>} : memref<16x4xf32, #tpu.memory_space<vmem>>, vector<16x4xf32>,
      %cst_83 = arith.constant 0.000000e+00 : f32
      %135 = vector.broadcast %cst_83 : f32 to vector<16x128xf32>
      %c0_84 = arith.constant 0 : index
      %c0_85 = arith.constant 0 : index
      %136 = vector.load %arg22[%c0_84, %c0_85] : memref<16x128xf32, #tpu.memory_space<vmem>>, vector<16x128xf32>
      tpu.vector_store %arg22[%c0_84, %c0_85], %135 {strides = array<i32>} : memref<16x128xf32, #tpu.memory_space<vmem>>, vector<16x128xf32>,
    } else {
    }
    %c0 = arith.constant 0 : index
    %c0_1 = arith.constant 0 : index
    %3 = vector.load %arg19[%c0, %c0_1] : memref<16x128xbf16, #tpu.memory_space<vmem>>, vector<16x128xbf16>
    %c0_2 = arith.constant 0 : index
    %c0_3 = arith.constant 0 : index
    %c0_4 = arith.constant 0 : index
    %4 = vector.load %arg4[%c0_2, %c0_3, %c0_4] : memref<1x16x128xbf16, #tpu.memory_space<vmem>>, vector<1x16x128xbf16>
    %5 = vector.shape_cast %4 : vector<1x16x128xbf16> to vector<16x128xbf16>
    %c0_5 = arith.constant 0 : index
    %c0_6 = arith.constant 0 : index
    %c0_7 = arith.constant 0 : index
    %6 = vector.load %arg5[%c0_5, %c0_6, %c0_7] : memref<1x16x128xbf16, #tpu.memory_space<vmem>>, vector<1x16x128xbf16>
    %7 = vector.shape_cast %6 : vector<1x16x128xbf16> to vector<16x128xbf16>
    %8 = vector.extract_strided_slice %3 {offsets = [0, 0], sizes = [16, 32], strides = [1, 1]} : vector<16x128xbf16> to vector<16x32xbf16>
    %9 = vector.extract_strided_slice %5 {offsets = [0, 0], sizes = [16, 32], strides = [1, 1]} : vector<16x128xbf16> to vector<16x32xbf16>
    %cst = arith.constant dense<0.000000e+00> : vector<16x16xf32>
    %10 = tpu.matmul %8, %9, %cst {dimension_numbers = #tpu.dot_dimension_numbers<[1], [1], [0], [0], [0, 0, 1, 0], [], []>} : vector<16x32xbf16>, vector<16x32xbf16>, vector<16x16xf32> -> vector<16x16xf32>
    %c0_8 = arith.constant 0 : index
    %c0_9 = arith.constant 0 : index
    %11 = vector.load %arg20[%c0_8, %c0_9] : memref<16x4xf32, #tpu.memory_space<vmem>>, vector<16x1xf32>
    %cst_10 = arith.constant dense<0xFF800000> : vector<16xf32>
    %12 = vector.multi_reduction <maximumf>, %10, %cst_10 [1] : vector<16x16xf32> to vector<16xf32>
    %13 = vector.shape_cast %12 : vector<16xf32> to vector<16x1xf32>
    %14 = arith.maximumf %11, %13 : vector<16x1xf32>
    %15 = arith.subf %11, %14 : vector<16x1xf32>
    %16 = math.exp %15 : vector<16x1xf32>
    %17 = vector.broadcast %14 : vector<16x1xf32> to vector<16x16xf32>
    %18 = arith.subf %10, %17 : vector<16x16xf32>
    %19 = math.exp %18 : vector<16x16xf32>
    %c0_11 = arith.constant 0 : index
    %c0_12 = arith.constant 0 : index
    %20 = vector.load %arg21[%c0_11, %c0_12] : memref<16x4xf32, #tpu.memory_space<vmem>>, vector<16x1xf32>
    %21 = arith.mulf %16, %20 : vector<16x1xf32>
    %cst_13 = arith.constant dense<0.000000e+00> : vector<16xf32>
    %22 = vector.multi_reduction <add>, %19, %cst_13 [1] : vector<16x16xf32> to vector<16xf32>
    %23 = vector.shape_cast %22 : vector<16xf32> to vector<16x1xf32>
    %24 = arith.addf %21, %23 : vector<16x1xf32>
    %c0_14 = arith.constant 0 : index
    %c0_15 = arith.constant 0 : index
    %25 = vector.load %arg21[%c0_14, %c0_15] : memref<16x4xf32, #tpu.memory_space<vmem>>, vector<16x1xf32>
    tpu.vector_store %arg21[%c0_14, %c0_15], %24 {strides = array<i32>} : memref<16x4xf32, #tpu.memory_space<vmem>>, vector<16x1xf32>,
    %26 = arith.truncf %19 : vector<16x16xf32> to vector<16x16xbf16>
    %27 = vector.extract_strided_slice %7 {offsets = [0, 0], sizes = [16, 32], strides = [1, 1]} : vector<16x128xbf16> to vector<16x32xbf16>
    %cst_16 = arith.constant dense<0.000000e+00> : vector<16x32xf32>
    %28 = tpu.matmul %26, %27, %cst_16 {dimension_numbers = #tpu.dot_dimension_numbers<[1], [0], [0], [1], [0, 0, 1, 1], [], []>} : vector<16x16xbf16>, vector<16x32xbf16>, vector<16x32xf32> -> vector<16x32xf32>
    %c0_17 = arith.constant 0 : index
    %c0_18 = arith.constant 0 : index
    %29 = vector.load %arg22[%c0_17, %c0_18] : memref<16x128xf32, #tpu.memory_space<vmem>>, vector<16x32xf32>
    %30 = vector.broadcast %16 : vector<16x1xf32> to vector<16x32xf32>
    %31 = arith.mulf %30, %29 : vector<16x32xf32>
    %32 = arith.addf %31, %28 : vector<16x32xf32>
    %c0_19 = arith.constant 0 : index
    %c0_20 = arith.constant 0 : index
    %33 = vector.load %arg22[%c0_19, %c0_20] : memref<16x128xf32, #tpu.memory_space<vmem>>, vector<16x32xf32>
    tpu.vector_store %arg22[%c0_19, %c0_20], %32 {strides = array<i32>} : memref<16x128xf32, #tpu.memory_space<vmem>>, vector<16x32xf32>,
    %c0_21 = arith.constant 0 : index
    %c0_22 = arith.constant 0 : index
    %34 = vector.load %arg20[%c0_21, %c0_22] : memref<16x4xf32, #tpu.memory_space<vmem>>, vector<16x1xf32>
    tpu.vector_store %arg20[%c0_21, %c0_22], %14 {strides = array<i32>} : memref<16x4xf32, #tpu.memory_space<vmem>>, vector<16x1xf32>,
    %35 = vector.extract_strided_slice %3 {offsets = [0, 32], sizes = [16, 32], strides = [1, 1]} : vector<16x128xbf16> to vector<16x32xbf16>
    %36 = vector.extract_strided_slice %5 {offsets = [0, 32], sizes = [16, 32], strides = [1, 1]} : vector<16x128xbf16> to vector<16x32xbf16>
    %cst_23 = arith.constant dense<0.000000e+00> : vector<16x16xf32>
    %37 = tpu.matmul %35, %36, %cst_23 {dimension_numbers = #tpu.dot_dimension_numbers<[1], [1], [0], [0], [0, 0, 1, 0], [], []>} : vector<16x32xbf16>, vector<16x32xbf16>, vector<16x16xf32> -> vector<16x16xf32>
    %c0_24 = arith.constant 0 : index
    %c1 = arith.constant 1 : index
    %38 = vector.load %arg20[%c0_24, %c1] : memref<16x4xf32, #tpu.memory_space<vmem>>, vector<16x1xf32>
    %cst_25 = arith.constant dense<0xFF800000> : vector<16xf32>
    %39 = vector.multi_reduction <maximumf>, %37, %cst_25 [1] : vector<16x16xf32> to vector<16xf32>
    %40 = vector.shape_cast %39 : vector<16xf32> to vector<16x1xf32>
    %41 = arith.maximumf %38, %40 : vector<16x1xf32>
    %42 = arith.subf %38, %41 : vector<16x1xf32>
    %43 = math.exp %42 : vector<16x1xf32>
    %44 = vector.broadcast %41 : vector<16x1xf32> to vector<16x16xf32>
    %45 = arith.subf %37, %44 : vector<16x16xf32>
    %46 = math.exp %45 : vector<16x16xf32>
    %c0_26 = arith.constant 0 : index
    %c1_27 = arith.constant 1 : index
    %47 = vector.load %arg21[%c0_26, %c1_27] : memref<16x4xf32, #tpu.memory_space<vmem>>, vector<16x1xf32>
    %48 = arith.mulf %43, %47 : vector<16x1xf32>
    %cst_28 = arith.constant dense<0.000000e+00> : vector<16xf32>
    %49 = vector.multi_reduction <add>, %46, %cst_28 [1] : vector<16x16xf32> to vector<16xf32>
    %50 = vector.shape_cast %49 : vector<16xf32> to vector<16x1xf32>
    %51 = arith.addf %48, %50 : vector<16x1xf32>
    %c0_29 = arith.constant 0 : index
    %c1_30 = arith.constant 1 : index
    %52 = vector.load %arg21[%c0_29, %c1_30] : memref<16x4xf32, #tpu.memory_space<vmem>>, vector<16x1xf32>
    tpu.vector_store %arg21[%c0_29, %c1_30], %51 {strides = array<i32>} : memref<16x4xf32, #tpu.memory_space<vmem>>, vector<16x1xf32>,
    %53 = arith.truncf %46 : vector<16x16xf32> to vector<16x16xbf16>
    %54 = vector.extract_strided_slice %7 {offsets = [0, 32], sizes = [16, 32], strides = [1, 1]} : vector<16x128xbf16> to vector<16x32xbf16>
    %cst_31 = arith.constant dense<0.000000e+00> : vector<16x32xf32>
    %55 = tpu.matmul %53, %54, %cst_31 {dimension_numbers = #tpu.dot_dimension_numbers<[1], [0], [0], [1], [0, 0, 1, 1], [], []>} : vector<16x16xbf16>, vector<16x32xbf16>, vector<16x32xf32> -> vector<16x32xf32>
    %c0_32 = arith.constant 0 : index
    %c32 = arith.constant 32 : index
    %56 = vector.load %arg22[%c0_32, %c32] : memref<16x128xf32, #tpu.memory_space<vmem>>, vector<16x32xf32>
    %57 = vector.broadcast %43 : vector<16x1xf32> to vector<16x32xf32>
    %58 = arith.mulf %57, %56 : vector<16x32xf32>
    %59 = arith.addf %58, %55 : vector<16x32xf32>
    %c0_33 = arith.constant 0 : index
    %c32_34 = arith.constant 32 : index
    %60 = vector.load %arg22[%c0_33, %c32_34] : memref<16x128xf32, #tpu.memory_space<vmem>>, vector<16x32xf32>
    tpu.vector_store %arg22[%c0_33, %c32_34], %59 {strides = array<i32>} : memref<16x128xf32, #tpu.memory_space<vmem>>, vector<16x32xf32>,
    %c0_35 = arith.constant 0 : index
    %c1_36 = arith.constant 1 : index
    %61 = vector.load %arg20[%c0_35, %c1_36] : memref<16x4xf32, #tpu.memory_space<vmem>>, vector<16x1xf32>
    tpu.vector_store %arg20[%c0_35, %c1_36], %41 {strides = array<i32>} : memref<16x4xf32, #tpu.memory_space<vmem>>, vector<16x1xf32>,
    %62 = vector.extract_strided_slice %3 {offsets = [0, 64], sizes = [16, 32], strides = [1, 1]} : vector<16x128xbf16> to vector<16x32xbf16>
    %63 = vector.extract_strided_slice %5 {offsets = [0, 64], sizes = [16, 32], strides = [1, 1]} : vector<16x128xbf16> to vector<16x32xbf16>
    %cst_37 = arith.constant dense<0.000000e+00> : vector<16x16xf32>
    %64 = tpu.matmul %62, %63, %cst_37 {dimension_numbers = #tpu.dot_dimension_numbers<[1], [1], [0], [0], [0, 0, 1, 0], [], []>} : vector<16x32xbf16>, vector<16x32xbf16>, vector<16x16xf32> -> vector<16x16xf32>
    %c0_38 = arith.constant 0 : index
    %c2 = arith.constant 2 : index
    %65 = vector.load %arg20[%c0_38, %c2] : memref<16x4xf32, #tpu.memory_space<vmem>>, vector<16x1xf32>
    %cst_39 = arith.constant dense<0xFF800000> : vector<16xf32>
    %66 = vector.multi_reduction <maximumf>, %64, %cst_39 [1] : vector<16x16xf32> to vector<16xf32>
    %67 = vector.shape_cast %66 : vector<16xf32> to vector<16x1xf32>
    %68 = arith.maximumf %65, %67 : vector<16x1xf32>
    %69 = arith.subf %65, %68 : vector<16x1xf32>
    %70 = math.exp %69 : vector<16x1xf32>
    %71 = vector.broadcast %68 : vector<16x1xf32> to vector<16x16xf32>
    %72 = arith.subf %64, %71 : vector<16x16xf32>
    %73 = math.exp %72 : vector<16x16xf32>
    %c0_40 = arith.constant 0 : index
    %c2_41 = arith.constant 2 : index
    %74 = vector.load %arg21[%c0_40, %c2_41] : memref<16x4xf32, #tpu.memory_space<vmem>>, vector<16x1xf32>
    %75 = arith.mulf %70, %74 : vector<16x1xf32>
    %cst_42 = arith.constant dense<0.000000e+00> : vector<16xf32>
    %76 = vector.multi_reduction <add>, %73, %cst_42 [1] : vector<16x16xf32> to vector<16xf32>
    %77 = vector.shape_cast %76 : vector<16xf32> to vector<16x1xf32>
    %78 = arith.addf %75, %77 : vector<16x1xf32>
    %c0_43 = arith.constant 0 : index
    %c2_44 = arith.constant 2 : index
    %79 = vector.load %arg21[%c0_43, %c2_44] : memref<16x4xf32, #tpu.memory_space<vmem>>, vector<16x1xf32>
    tpu.vector_store %arg21[%c0_43, %c2_44], %78 {strides = array<i32>} : memref<16x4xf32, #tpu.memory_space<vmem>>, vector<16x1xf32>,
    %80 = arith.truncf %73 : vector<16x16xf32> to vector<16x16xbf16>
    %81 = vector.extract_strided_slice %7 {offsets = [0, 64], sizes = [16, 32], strides = [1, 1]} : vector<16x128xbf16> to vector<16x32xbf16>
    %cst_45 = arith.constant dense<0.000000e+00> : vector<16x32xf32>
    %82 = tpu.matmul %80, %81, %cst_45 {dimension_numbers = #tpu.dot_dimension_numbers<[1], [0], [0], [1], [0, 0, 1, 1], [], []>} : vector<16x16xbf16>, vector<16x32xbf16>, vector<16x32xf32> -> vector<16x32xf32>
    %c0_46 = arith.constant 0 : index
    %c64 = arith.constant 64 : index
    %83 = vector.load %arg22[%c0_46, %c64] : memref<16x128xf32, #tpu.memory_space<vmem>>, vector<16x32xf32>
    %84 = vector.broadcast %70 : vector<16x1xf32> to vector<16x32xf32>
    %85 = arith.mulf %84, %83 : vector<16x32xf32>
    %86 = arith.addf %85, %82 : vector<16x32xf32>
    %c0_47 = arith.constant 0 : index
    %c64_48 = arith.constant 64 : index
    %87 = vector.load %arg22[%c0_47, %c64_48] : memref<16x128xf32, #tpu.memory_space<vmem>>, vector<16x32xf32>
    tpu.vector_store %arg22[%c0_47, %c64_48], %86 {strides = array<i32>} : memref<16x128xf32, #tpu.memory_space<vmem>>, vector<16x32xf32>,
    %c0_49 = arith.constant 0 : index
    %c2_50 = arith.constant 2 : index
    %88 = vector.load %arg20[%c0_49, %c2_50] : memref<16x4xf32, #tpu.memory_space<vmem>>, vector<16x1xf32>
    tpu.vector_store %arg20[%c0_49, %c2_50], %68 {strides = array<i32>} : memref<16x4xf32, #tpu.memory_space<vmem>>, vector<16x1xf32>,
    %89 = vector.extract_strided_slice %3 {offsets = [0, 96], sizes = [16, 32], strides = [1, 1]} : vector<16x128xbf16> to vector<16x32xbf16>
    %90 = vector.extract_strided_slice %5 {offsets = [0, 96], sizes = [16, 32], strides = [1, 1]} : vector<16x128xbf16> to vector<16x32xbf16>
    %cst_51 = arith.constant dense<0.000000e+00> : vector<16x16xf32>
    %91 = tpu.matmul %89, %90, %cst_51 {dimension_numbers = #tpu.dot_dimension_numbers<[1], [1], [0], [0], [0, 0, 1, 0], [], []>} : vector<16x32xbf16>, vector<16x32xbf16>, vector<16x16xf32> -> vector<16x16xf32>
    %c0_52 = arith.constant 0 : index
    %c3 = arith.constant 3 : index
    %92 = vector.load %arg20[%c0_52, %c3] : memref<16x4xf32, #tpu.memory_space<vmem>>, vector<16x1xf32>
    %cst_53 = arith.constant dense<0xFF800000> : vector<16xf32>
    %93 = vector.multi_reduction <maximumf>, %91, %cst_53 [1] : vector<16x16xf32> to vector<16xf32>
    %94 = vector.shape_cast %93 : vector<16xf32> to vector<16x1xf32>
    %95 = arith.maximumf %92, %94 : vector<16x1xf32>
    %96 = arith.subf %92, %95 : vector<16x1xf32>
    %97 = math.exp %96 : vector<16x1xf32>
    %98 = vector.broadcast %95 : vector<16x1xf32> to vector<16x16xf32>
    %99 = arith.subf %91, %98 : vector<16x16xf32>
    %100 = math.exp %99 : vector<16x16xf32>
    %c0_54 = arith.constant 0 : index
    %c3_55 = arith.constant 3 : index
    %101 = vector.load %arg21[%c0_54, %c3_55] : memref<16x4xf32, #tpu.memory_space<vmem>>, vector<16x1xf32>
    %102 = arith.mulf %97, %101 : vector<16x1xf32>
    %cst_56 = arith.constant dense<0.000000e+00> : vector<16xf32>
    %103 = vector.multi_reduction <add>, %100, %cst_56 [1] : vector<16x16xf32> to vector<16xf32>
    %104 = vector.shape_cast %103 : vector<16xf32> to vector<16x1xf32>
    %105 = arith.addf %102, %104 : vector<16x1xf32>
    %c0_57 = arith.constant 0 : index
    %c3_58 = arith.constant 3 : index
    %106 = vector.load %arg21[%c0_57, %c3_58] : memref<16x4xf32, #tpu.memory_space<vmem>>, vector<16x1xf32>
    tpu.vector_store %arg21[%c0_57, %c3_58], %105 {strides = array<i32>} : memref<16x4xf32, #tpu.memory_space<vmem>>, vector<16x1xf32>,
    %107 = arith.truncf %100 : vector<16x16xf32> to vector<16x16xbf16>
    %108 = vector.extract_strided_slice %7 {offsets = [0, 96], sizes = [16, 32], strides = [1, 1]} : vector<16x128xbf16> to vector<16x32xbf16>
    %cst_59 = arith.constant dense<0.000000e+00> : vector<16x32xf32>
    %109 = tpu.matmul %107, %108, %cst_59 {dimension_numbers = #tpu.dot_dimension_numbers<[1], [0], [0], [1], [0, 0, 1, 1], [], []>} : vector<16x16xbf16>, vector<16x32xbf16>, vector<16x32xf32> -> vector<16x32xf32>
    %c0_60 = arith.constant 0 : index
    %c96 = arith.constant 96 : index
    %110 = vector.load %arg22[%c0_60, %c96] : memref<16x128xf32, #tpu.memory_space<vmem>>, vector<16x32xf32>
    %111 = vector.broadcast %97 : vector<16x1xf32> to vector<16x32xf32>
    %112 = arith.mulf %111, %110 : vector<16x32xf32>
    %113 = arith.addf %112, %109 : vector<16x32xf32>
    %c0_61 = arith.constant 0 : index
    %c96_62 = arith.constant 96 : index
    %114 = vector.load %arg22[%c0_61, %c96_62] : memref<16x128xf32, #tpu.memory_space<vmem>>, vector<16x32xf32>
    tpu.vector_store %arg22[%c0_61, %c96_62], %113 {strides = array<i32>} : memref<16x128xf32, #tpu.memory_space<vmem>>, vector<16x32xf32>,
    %c0_63 = arith.constant 0 : index
    %c3_64 = arith.constant 3 : index
    %115 = vector.load %arg20[%c0_63, %c3_64] : memref<16x4xf32, #tpu.memory_space<vmem>>, vector<16x1xf32>
    tpu.vector_store %arg20[%c0_63, %c3_64], %95 {strides = array<i32>} : memref<16x4xf32, #tpu.memory_space<vmem>>, vector<16x1xf32>,
    %c1_i32 = arith.constant 1 : i32
    %116 = arith.cmpi eq, %arg2, %c1_i32 : i32
    %117 = arith.extui %116 : i1 to i32
    %c0_i32_65 = arith.constant 0 : i32
    %118 = arith.cmpi ne, %117, %c0_i32_65 : i32
    scf.if %118 {
      %c0_66 = arith.constant 0 : index
      %c0_67 = arith.constant 0 : index
      %119 = vector.load %arg22[%c0_66, %c0_67] : memref<16x128xf32, #tpu.memory_space<vmem>>, vector<16x32xf32>
      %c0_68 = arith.constant 0 : index
      %c0_69 = arith.constant 0 : index
      %120 = vector.load %arg21[%c0_68, %c0_69] : memref<16x4xf32, #tpu.memory_space<vmem>>, vector<16x1xf32>
      %121 = tpu.reciprocal %120 {approx = true} : vector<16x1xf32> -> vector<16x1xf32>
      %122 = vector.broadcast %121 : vector<16x1xf32> to vector<16x32xf32>
      %123 = arith.mulf %119, %122 : vector<16x32xf32>
      %c0_70 = arith.constant 0 : index
      %c0_71 = arith.constant 0 : index
      %124 = vector.load %arg22[%c0_70, %c0_71] : memref<16x128xf32, #tpu.memory_space<vmem>>, vector<16x32xf32>
      tpu.vector_store %arg22[%c0_70, %c0_71], %123 {strides = array<i32>} : memref<16x128xf32, #tpu.memory_space<vmem>>, vector<16x32xf32>,
      %c0_72 = arith.constant 0 : index
      %c32_73 = arith.constant 32 : index
      %125 = vector.load %arg22[%c0_72, %c32_73] : memref<16x128xf32, #tpu.memory_space<vmem>>, vector<16x32xf32>
      %c0_74 = arith.constant 0 : index
      %c1_75 = arith.constant 1 : index
      %126 = vector.load %arg21[%c0_74, %c1_75] : memref<16x4xf32, #tpu.memory_space<vmem>>, vector<16x1xf32>
      %127 = tpu.reciprocal %126 {approx = true} : vector<16x1xf32> -> vector<16x1xf32>
      %128 = vector.broadcast %127 : vector<16x1xf32> to vector<16x32xf32>
      %129 = arith.mulf %125, %128 : vector<16x32xf32>
      %c0_76 = arith.constant 0 : index
      %c32_77 = arith.constant 32 : index
      %130 = vector.load %arg22[%c0_76, %c32_77] : memref<16x128xf32, #tpu.memory_space<vmem>>, vector<16x32xf32>
      tpu.vector_store %arg22[%c0_76, %c32_77], %129 {strides = array<i32>} : memref<16x128xf32, #tpu.memory_space<vmem>>, vector<16x32xf32>,
      %c0_78 = arith.constant 0 : index
      %c64_79 = arith.constant 64 : index
      %131 = vector.load %arg22[%c0_78, %c64_79] : memref<16x128xf32, #tpu.memory_space<vmem>>, vector<16x32xf32>
      %c0_80 = arith.constant 0 : index
      %c2_81 = arith.constant 2 : index
      %132 = vector.load %arg21[%c0_80, %c2_81] : memref<16x4xf32, #tpu.memory_space<vmem>>, vector<16x1xf32>
      %133 = tpu.reciprocal %132 {approx = true} : vector<16x1xf32> -> vector<16x1xf32>
      %134 = vector.broadcast %133 : vector<16x1xf32> to vector<16x32xf32>
      %135 = arith.mulf %131, %134 : vector<16x32xf32>
      %c0_82 = arith.constant 0 : index
      %c64_83 = arith.constant 64 : index
      %136 = vector.load %arg22[%c0_82, %c64_83] : memref<16x128xf32, #tpu.memory_space<vmem>>, vector<16x32xf32>
      tpu.vector_store %arg22[%c0_82, %c64_83], %135 {strides = array<i32>} : memref<16x128xf32, #tpu.memory_space<vmem>>, vector<16x32xf32>,
      %c0_84 = arith.constant 0 : index
      %c96_85 = arith.constant 96 : index
      %137 = vector.load %arg22[%c0_84, %c96_85] : memref<16x128xf32, #tpu.memory_space<vmem>>, vector<16x32xf32>
      %c0_86 = arith.constant 0 : index
      %c3_87 = arith.constant 3 : index
      %138 = vector.load %arg21[%c0_86, %c3_87] : memref<16x4xf32, #tpu.memory_space<vmem>>, vector<16x1xf32>
      %139 = tpu.reciprocal %138 {approx = true} : vector<16x1xf32> -> vector<16x1xf32>
      %140 = vector.broadcast %139 : vector<16x1xf32> to vector<16x32xf32>
      %141 = arith.mulf %137, %140 : vector<16x32xf32>
      %c0_88 = arith.constant 0 : index
      %c96_89 = arith.constant 96 : index
      %142 = vector.load %arg22[%c0_88, %c96_89] : memref<16x128xf32, #tpu.memory_space<vmem>>, vector<16x32xf32>
      tpu.vector_store %arg22[%c0_88, %c96_89], %141 {strides = array<i32>} : memref<16x128xf32, #tpu.memory_space<vmem>>, vector<16x32xf32>,
      %c0_90 = arith.constant 0 : index
      %c0_91 = arith.constant 0 : index
      %143 = vector.load %arg22[%c0_90, %c0_91] : memref<16x128xf32, #tpu.memory_space<vmem>>, vector<16x128xf32>
      %144 = arith.truncf %143 : vector<16x128xf32> to vector<16x128xbf16>
      %c0_92 = arith.constant 0 : index
      %c0_93 = arith.constant 0 : index
      %145 = vector.load %arg8[%c0_92, %c0_93] : memref<128x128xbf16, #tpu.memory_space<vmem>>, vector<128x128xbf16>
      %cst_94 = arith.constant dense<0.000000e+00> : vector<16x128xf32>
      %146 = tpu.matmul %144, %145, %cst_94 {dimension_numbers = #tpu.dot_dimension_numbers<[1], [0], [0], [1], [0, 0, 1, 1], [], []>} : vector<16x128xbf16>, vector<128x128xbf16>, vector<16x128xf32> -> vector<16x128xf32>
      %c0_95 = arith.constant 0 : index
      %c0_96 = arith.constant 0 : index
      %147 = vector.load %arg9[%c0_95, %c0_96] : memref<1x128xf32, #tpu.memory_space<vmem>>, vector<1x128xf32>
      %148 = vector.broadcast %147 : vector<1x128xf32> to vector<16x128xf32>
      %149 = arith.addf %146, %148 : vector<16x128xf32>
      %c0_97 = arith.constant 0 : index
      %c0_98 = arith.constant 0 : index
      %c0_99 = arith.constant 0 : index
      %150 = vector.load %arg3[%c0_97, %c0_98, %c0_99] : memref<1x16x128xf32, #tpu.memory_space<vmem>>, vector<1x16x128xf32>
      %151 = vector.shape_cast %150 : vector<1x16x128xf32> to vector<16x128xf32>
      %152 = arith.addf %151, %149 : vector<16x128xf32>
      %cst_100 = arith.constant dense<0.000000e+00> : vector<16xf32>
      %153 = vector.multi_reduction <add>, %152, %cst_100 [1] : vector<16x128xf32> to vector<16xf32>
      %154 = vector.shape_cast %153 : vector<16xf32> to vector<16x1xf32>
      %cst_101 = arith.constant 1.280000e+02 : f32
      %155 = vector.broadcast %cst_101 : f32 to vector<16x1xf32>
      %156 = arith.divf %154, %155 : vector<16x1xf32>
      %157 = vector.broadcast %156 : vector<16x1xf32> to vector<16x128xf32>
      %158 = arith.subf %152, %157 : vector<16x128xf32>
      %159 = arith.mulf %158, %158 : vector<16x128xf32>
      %cst_102 = arith.constant dense<0.000000e+00> : vector<16xf32>
      %160 = vector.multi_reduction <add>, %159, %cst_102 [1] : vector<16x128xf32> to vector<16xf32>
      %161 = vector.shape_cast %160 : vector<16xf32> to vector<16x1xf32>
      %cst_103 = arith.constant 1.280000e+02 : f32
      %162 = vector.broadcast %cst_103 : f32 to vector<16x1xf32>
      %163 = arith.divf %161, %162 : vector<16x1xf32>
      %164 = vector.broadcast %156 : vector<16x1xf32> to vector<16x128xf32>
      %165 = arith.subf %152, %164 : vector<16x128xf32>
      %cst_104 = arith.constant 9.99999974E-6 : f32
      %166 = vector.broadcast %cst_104 : f32 to vector<16x1xf32>
      %167 = arith.addf %163, %166 : vector<16x1xf32>
      %168 = math.rsqrt %167 : vector<16x1xf32>
      %169 = vector.broadcast %168 : vector<16x1xf32> to vector<16x128xf32>
      %170 = arith.mulf %165, %169 : vector<16x128xf32>
      %c0_105 = arith.constant 0 : index
      %c0_106 = arith.constant 0 : index
      %171 = vector.load %arg10[%c0_105, %c0_106] : memref<1x128xf32, #tpu.memory_space<vmem>>, vector<1x128xf32>
      %172 = vector.broadcast %171 : vector<1x128xf32> to vector<16x128xf32>
      %173 = arith.mulf %170, %172 : vector<16x128xf32>
      %c0_107 = arith.constant 0 : index
      %c0_108 = arith.constant 0 : index
      %174 = vector.load %arg11[%c0_107, %c0_108] : memref<1x128xf32, #tpu.memory_space<vmem>>, vector<1x128xf32>
      %175 = vector.broadcast %174 : vector<1x128xf32> to vector<16x128xf32>
      %176 = arith.addf %173, %175 : vector<16x128xf32>
      %177 = arith.truncf %176 : vector<16x128xf32> to vector<16x128xbf16>
      %cst_109 = arith.constant 0.000000e+00 : f32
      %178 = vector.broadcast %cst_109 : f32 to vector<16x128xf32>
      %c0_110 = arith.constant 0 : index
      %c0_111 = arith.constant 0 : index
      %179 = vector.load %arg12[%c0_110, %c0_111] : memref<128x256xbf16, #tpu.memory_space<vmem>>, vector<128x256xbf16>
      %cst_112 = arith.constant dense<0.000000e+00> : vector<16x256xf32>
      %180 = tpu.matmul %177, %179, %cst_112 {dimension_numbers = #tpu.dot_dimension_numbers<[1], [0], [0], [1], [0, 0, 1, 1], [], []>} : vector<16x128xbf16>, vector<128x256xbf16>, vector<16x256xf32> -> vector<16x256xf32>
      %c0_113 = arith.constant 0 : index
      %c0_114 = arith.constant 0 : index
      %181 = vector.load %arg13[%c0_113, %c0_114] : memref<1x256xf32, #tpu.memory_space<vmem>>, vector<1x256xf32>
      %182 = vector.broadcast %181 : vector<1x256xf32> to vector<16x256xf32>
      %183 = arith.addf %180, %182 : vector<16x256xf32>
      %cst_115 = arith.constant 0.000000e+00 : f32
      %184 = vector.broadcast %cst_115 : f32 to vector<16x256xf32>
      %185 = arith.maximumf %183, %184 : vector<16x256xf32>
      %186 = arith.truncf %185 : vector<16x256xf32> to vector<16x256xbf16>
      %c0_116 = arith.constant 0 : index
      %c0_117 = arith.constant 0 : index
      %187 = vector.load %arg14[%c0_116, %c0_117] : memref<256x128xbf16, #tpu.memory_space<vmem>>, vector<256x128xbf16>
      %cst_118 = arith.constant dense<0.000000e+00> : vector<16x128xf32>
      %188 = tpu.matmul %186, %187, %cst_118 {dimension_numbers = #tpu.dot_dimension_numbers<[1], [0], [0], [1], [0, 0, 1, 1], [], []>} : vector<16x256xbf16>, vector<256x128xbf16>, vector<16x128xf32> -> vector<16x128xf32>
      %189 = arith.addf %178, %188 : vector<16x128xf32>
      %190 = arith.addf %176, %189 : vector<16x128xf32>
      %c0_119 = arith.constant 0 : index
      %c0_120 = arith.constant 0 : index
      %191 = vector.load %arg15[%c0_119, %c0_120] : memref<1x128xf32, #tpu.memory_space<vmem>>, vector<1x128xf32>
      %192 = vector.broadcast %191 : vector<1x128xf32> to vector<16x128xf32>
      %193 = arith.addf %190, %192 : vector<16x128xf32>
      %cst_121 = arith.constant dense<0.000000e+00> : vector<16xf32>
      %194 = vector.multi_reduction <add>, %193, %cst_121 [1] : vector<16x128xf32> to vector<16xf32>
      %195 = vector.shape_cast %194 : vector<16xf32> to vector<16x1xf32>
      %cst_122 = arith.constant 1.280000e+02 : f32
      %196 = vector.broadcast %cst_122 : f32 to vector<16x1xf32>
      %197 = arith.divf %195, %196 : vector<16x1xf32>
      %198 = vector.broadcast %197 : vector<16x1xf32> to vector<16x128xf32>
      %199 = arith.subf %193, %198 : vector<16x128xf32>
      %200 = arith.mulf %199, %199 : vector<16x128xf32>
      %cst_123 = arith.constant dense<0.000000e+00> : vector<16xf32>
      %201 = vector.multi_reduction <add>, %200, %cst_123 [1] : vector<16x128xf32> to vector<16xf32>
      %202 = vector.shape_cast %201 : vector<16xf32> to vector<16x1xf32>
      %cst_124 = arith.constant 1.280000e+02 : f32
      %203 = vector.broadcast %cst_124 : f32 to vector<16x1xf32>
      %204 = arith.divf %202, %203 : vector<16x1xf32>
      %205 = vector.broadcast %197 : vector<16x1xf32> to vector<16x128xf32>
      %206 = arith.subf %193, %205 : vector<16x128xf32>
      %cst_125 = arith.constant 9.99999974E-6 : f32
      %207 = vector.broadcast %cst_125 : f32 to vector<16x1xf32>
      %208 = arith.addf %204, %207 : vector<16x1xf32>
      %209 = math.rsqrt %208 : vector<16x1xf32>
      %210 = vector.broadcast %209 : vector<16x1xf32> to vector<16x128xf32>
      %211 = arith.mulf %206, %210 : vector<16x128xf32>
      %c0_126 = arith.constant 0 : index
      %c0_127 = arith.constant 0 : index
      %212 = vector.load %arg16[%c0_126, %c0_127] : memref<1x128xf32, #tpu.memory_space<vmem>>, vector<1x128xf32>
      %213 = vector.broadcast %212 : vector<1x128xf32> to vector<16x128xf32>
      %214 = arith.mulf %211, %213 : vector<16x128xf32>
      %c0_128 = arith.constant 0 : index
      %c0_129 = arith.constant 0 : index
      %215 = vector.load %arg17[%c0_128, %c0_129] : memref<1x128xf32, #tpu.memory_space<vmem>>, vector<1x128xf32>
      %216 = vector.broadcast %215 : vector<1x128xf32> to vector<16x128xf32>
      %217 = arith.addf %214, %216 : vector<16x128xf32>
      %c0_130 = arith.constant 0 : index
      %c0_131 = arith.constant 0 : index
      %c0_132 = arith.constant 0 : index
      %218 = vector.load %arg18[%c0_130, %c0_131, %c0_132] : memref<1x16x128xf32, #tpu.memory_space<vmem>>, vector<1x16x128xf32>
      %219 = vector.shape_cast %218 : vector<1x16x128xf32> to vector<16x128xf32>
      %220 = vector.shape_cast %217 : vector<16x128xf32> to vector<1x16x128xf32>
      tpu.vector_store %arg18[%c0_130, %c0_131, %c0_132], %220 {strides = array<i32>} : memref<1x16x128xf32, #tpu.memory_space<vmem>>, vector<1x16x128xf32>,
    } else {
    }
    return
  }
  func.func @transform_0(%arg0: i32, %arg1: i32, %arg2: i32) -> (i32, i32, i32) {
    %c0_i32 = arith.constant 0 : i32
    %c0_i32_0 = arith.constant 0 : i32
    return %arg0, %arg1, %c0_i32 : i32, i32, i32
  }
  func.func @transform_1(%arg0: i32, %arg1: i32, %arg2: i32) -> (i32, i32, i32) {
    %c0_i32 = arith.constant 0 : i32
    %c0_i32_0 = arith.constant 0 : i32
    return %arg0, %arg2, %c0_i32 : i32, i32, i32
  }
  func.func @transform_2(%arg0: i32, %arg1: i32, %arg2: i32) -> (i32, i32, i32) {
    %c0_i32 = arith.constant 0 : i32
    %c0_i32_0 = arith.constant 0 : i32
    return %arg0, %arg2, %c0_i32 : i32, i32, i32
  }
  func.func @transform_3(%arg0: i32, %arg1: i32, %arg2: i32) -> (i32, i32) {
    %c0_i32 = arith.constant 0 : i32
    %c0_i32_0 = arith.constant 0 : i32
    %c0_i32_1 = arith.constant 0 : i32
    return %c0_i32, %c0_i32_0 : i32, i32
  }
  func.func @transform_4(%arg0: i32, %arg1: i32, %arg2: i32) -> (i32, i32) {
    %c0_i32 = arith.constant 0 : i32
    %c0_i32_0 = arith.constant 0 : i32
    %c0_i32_1 = arith.constant 0 : i32
    return %c0_i32, %c0_i32_0 : i32, i32
  }
  func.func @transform_5(%arg0: i32, %arg1: i32, %arg2: i32) -> (i32, i32) {
    %c0_i32 = arith.constant 0 : i32
    %c0_i32_0 = arith.constant 0 : i32
    %c0_i32_1 = arith.constant 0 : i32
    return %c0_i32, %c0_i32_0 : i32, i32
  }
  func.func @transform_6(%arg0: i32, %arg1: i32, %arg2: i32) -> (i32, i32) {
    %c0_i32 = arith.constant 0 : i32
    %c0_i32_0 = arith.constant 0 : i32
    %c0_i32_1 = arith.constant 0 : i32
    return %c0_i32, %c0_i32_0 : i32, i32
  }
  func.func @transform_7(%arg0: i32, %arg1: i32, %arg2: i32) -> (i32, i32) {
    %c0_i32 = arith.constant 0 : i32
    %c0_i32_0 = arith.constant 0 : i32
    %c0_i32_1 = arith.constant 0 : i32
    return %c0_i32, %c0_i32_0 : i32, i32
  }
  func.func @transform_8(%arg0: i32, %arg1: i32, %arg2: i32) -> (i32, i32) {
    %c0_i32 = arith.constant 0 : i32
    %c0_i32_0 = arith.constant 0 : i32
    %c0_i32_1 = arith.constant 0 : i32
    return %c0_i32, %c0_i32_0 : i32, i32
  }
  func.func @transform_9(%arg0: i32, %arg1: i32, %arg2: i32) -> (i32, i32) {
    %c0_i32 = arith.constant 0 : i32
    %c0_i32_0 = arith.constant 0 : i32
    %c0_i32_1 = arith.constant 0 : i32
    return %c0_i32, %c0_i32_0 : i32, i32
  }
  func.func @transform_10(%arg0: i32, %arg1: i32, %arg2: i32) -> (i32, i32) {
    %c0_i32 = arith.constant 0 : i32
    %c0_i32_0 = arith.constant 0 : i32
    %c0_i32_1 = arith.constant 0 : i32
    return %c0_i32, %c0_i32_0 : i32, i32
  }
  func.func @transform_11(%arg0: i32, %arg1: i32, %arg2: i32) -> (i32, i32) {
    %c0_i32 = arith.constant 0 : i32
    %c0_i32_0 = arith.constant 0 : i32
    %c0_i32_1 = arith.constant 0 : i32
    return %c0_i32, %c0_i32_0 : i32, i32
  }
  func.func @transform_12(%arg0: i32, %arg1: i32, %arg2: i32) -> (i32, i32) {
    %c0_i32 = arith.constant 0 : i32
    %c0_i32_0 = arith.constant 0 : i32
    %c0_i32_1 = arith.constant 0 : i32
    return %c0_i32, %c0_i32_0 : i32, i32
  }
  func.func @transform_13(%arg0: i32, %arg1: i32, %arg2: i32) -> (i32, i32) {
    %c0_i32 = arith.constant 0 : i32
    %c0_i32_0 = arith.constant 0 : i32
    %c0_i32_1 = arith.constant 0 : i32
    return %c0_i32, %c0_i32_0 : i32, i32
  }
  func.func @transform_14(%arg0: i32, %arg1: i32, %arg2: i32) -> (i32, i32) {
    %c0_i32 = arith.constant 0 : i32
    %c0_i32_0 = arith.constant 0 : i32
    %c0_i32_1 = arith.constant 0 : i32
    return %c0_i32, %c0_i32_0 : i32, i32
  }
  func.func @transform_15(%arg0: i32, %arg1: i32, %arg2: i32) -> (i32, i32, i32) {
    %c0_i32 = arith.constant 0 : i32
    %c0_i32_0 = arith.constant 0 : i32
    return %arg0, %arg1, %c0_i32 : i32, i32, i32
  }
}

</mosaic_0001>

<llo_original>
// kernel: tpu_custom_call.1
$region0: #{tpu_custom_call.1}
  #allocation0 [shape = 'u32[]', space=smem, size = 0x4, offset = 0x4, fixed_abs, tag = 'smem constant byte address 0x4 - core index']
  #allocation1 [shape = 'u32[144,128]{1,0:T(1,128)}', space=vmem, size = 0x12000, scoped, tag = 'internal scratch']
  #allocation2 [shape = 'bf16[16,128]{1,0:T(16,128)(2,1)}', space=vmem, size = 0x1000, scoped, tag = 'scratch operand']
  #allocation3 [shape = 'f32[16,4]{1,0:T(8,128)}', space=vmem, size = 0x2000, scoped, tag = 'scratch operand']
  #allocation4 [shape = 'f32[16,4]{1,0:T(8,128)}', space=vmem, size = 0x2000, scoped, tag = 'scratch operand']
  #allocation5 [shape = 'f32[16,128]{1,0:T(8,128)}', space=vmem, size = 0x2000, scoped, tag = 'scratch operand']
  %s0 = inlined_call_operand.hbm [shape: f32[2,32,128], index: 0, kind: input, shape index: {}]
  %s1 = inlined_call_operand.hbm [shape: bf16[2,32,128], index: 1, kind: input, shape index: {}]
  %s2 = inlined_call_operand.hbm [shape: bf16[2,32,128], index: 2, kind: input, shape index: {}]
  %s3 = inlined_call_operand.hbm [shape: bf16[128,128], index: 3, kind: input, shape index: {}]
  %s4 = inlined_call_operand.vmem [shape: f32[1,128], index: 4, kind: input, shape index: {}]
  %s5 = inlined_call_operand.hbm [shape: bf16[128,128], index: 5, kind: input, shape index: {}]
  %s6 = inlined_call_operand.vmem [shape: f32[1,128], index: 6, kind: input, shape index: {}]
  %s7 = inlined_call_operand.vmem [shape: f32[1,128], index: 7, kind: input, shape index: {}]
  %s8 = inlined_call_operand.vmem [shape: f32[1,128], index: 8, kind: input, shape index: {}]
  %s9 = inlined_call_operand.hbm [shape: bf16[128,256], index: 9, kind: input, shape index: {}]
  %s10 = inlined_call_operand.vmem [shape: f32[1,256], index: 10, kind: input, shape index: {}]
  %s11 = inlined_call_operand.hbm [shape: bf16[256,128], index: 11, kind: input, shape index: {}]
  %s12 = inlined_call_operand.vmem [shape: f32[1,128], index: 12, kind: input, shape index: {}]
  %s13 = inlined_call_operand.vmem [shape: f32[1,128], index: 13, kind: input, shape index: {}]
  %s14 = inlined_call_operand.vmem [shape: f32[1,128], index: 14, kind: input, shape index: {}]
  %s15 = inlined_call_operand.hbm [shape: f32[2,32,128], index: 15, kind: output, shape index: {}]
  %s16 = sld [smem:[#allocation0]]
  $region129: #{tpu_custom_call.1} parent=0
    _
  %s18 = ssub.s32 1, %s16
  %s19 = scalar_select 0, %s18, %s16
  $region1: #{tpu_custom_call.1} parent=0
    #allocation6 [shape = 'u8[16384]{0}', space=vmem, size = 0x4000, scoped, tag = 'input window, operand 0']
    #allocation7 [shape = 's32[2]{0}', space=sflag, size = 0x8, scoped, tag = 'scoped memory for tpu_custom_call.1']
    #allocation8 [shape = 's32[2]{0}', space=sflag, size = 0x8, scoped, tag = 'scoped memory for tpu_custom_call.1']
    #allocation9 [shape = 'u8[8192]{0}', space=vmem, size = 0x2000, scoped, tag = 'input window, operand 1']
    #allocation10 [shape = 's32[2]{0}', space=sflag, size = 0x8, scoped, tag = 'scoped memory for tpu_custom_call.1']
    #allocation11 [shape = 'u8[8192]{0}', space=vmem, size = 0x2000, scoped, tag = 'input window, operand 2']
    #allocation12 [shape = 'u8[32768]{0}', space=vmem, size = 0x8000, scoped, tag = 'input window, operand 3, single buffered']
    #allocation13 [shape = 's32[1]{0}', space=sflag, size = 0x4, scoped, tag = 'scoped memory for tpu_custom_call.1']
    #allocation14 [shape = 'u8[32768]{0}', space=vmem, size = 0x8000, scoped, tag = 'input window, operand 5, single buffered']
    #allocation15 [shape = 'u8[65536]{0}', space=vmem, size = 0x10000, scoped, tag = 'input window, operand 9, single buffered']
    #allocation16 [shape = 's32[1]{0}', space=sflag, size = 0x4, scoped, tag = 'scoped memory for tpu_custom_call.1']
    #allocation17 [shape = 'u8[65536]{0}', space=vmem, size = 0x10000, scoped, tag = 'input window, operand 11, single buffered']
    #allocation18 [shape = 'u8[16384]{0}', space=vmem, size = 0x4000, scoped, tag = 'output window, operand 0']
    %20 = vsyncpa [#allocation7], 0
    %s21 = scalar_lea.sflag [#allocation7], 1
    %22 = vsyncpa %s21, 0
    %23 = vsyncpa [#allocation10], 0
    %s24 = scalar_lea.sflag [#allocation10], 1
    %25 = vsyncpa %s24, 0
    %26 = vsyncpa [#allocation13], 0
    %27 = vsyncpa [#allocation16], 0
    %28 = vsyncpa [#allocation8], 0
    %s29 = scalar_lea.sflag [#allocation8], 1
    %30 = vsyncpa %s29, 0
    loop: start=0, step=1, limit=10
    $region2: #{tpu_custom_call.1} parent=1 // loop_pre_header
      _
    $region3: #{tpu_custom_call.1} parent=1 // loop_header
      %s32 = sphi 0, %s36
      %p33 = scmp.ge.s32.totalorder %s32, 10
      %s39 = sphi 0, %s58
      %s40 = sphi 0, %s54
      %s41 = sphi 0, %s50
      %s42 = sphi 0, %s39
      %s43 = sphi 0, %s40
      %s44 = sphi 0, %s41
      %s45 = sphi 0, %s42
      %s46 = sphi 0, %s43
      %s47 = sphi 0, %s44
      %s63 = sphi 0, %s65
      %s66 = sphi 0, %s63
      %s67 = sphi 0, %s66
      %s83 = sphi 0, %s67
      %s91 = sphi 0, %s93
      %s94 = sphi 0, %s91
      %s95 = sphi 0, %s94
      %s111 = sphi 0, %s95
      %s119 = sphi 0, %s121
      %s122 = sphi 0, %s119
      %s123 = sphi 0, %s122
      %s139 = sphi 0, %s123
      %s143 = sphi 0, %s143
      %s145 = sphi 0, %s143
      %s146 = sphi 0, %s145
      %s160 = sphi 0, %s146
      %s164 = sphi 0, %s164
      %s166 = sphi 0, %s164
      %s167 = sphi 0, %s166
      %s181 = sphi 0, %s167
      %s185 = sphi 0, %s185
      %s187 = sphi 0, %s185
      %s188 = sphi 0, %s187
      %s202 = sphi 0, %s188
      %s206 = sphi 0, %s206
      %s208 = sphi 0, %s206
      %s209 = sphi 0, %s208
      %s223 = sphi 0, %s209
      %s227 = sphi 0, %s227
      %s229 = sphi 0, %s227
      %s230 = sphi 0, %s229
      %s244 = sphi 0, %s230
      %s248 = sphi 0, %s248
      %s250 = sphi 0, %s248
      %s251 = sphi 0, %s250
      %s265 = sphi 0, %s251
      %s269 = sphi 0, %s269
      %s271 = sphi 0, %s269
      %s272 = sphi 0, %s271
      %s286 = sphi 0, %s272
      %s290 = sphi 0, %s290
      %s292 = sphi 0, %s290
      %s293 = sphi 0, %s292
      %s307 = sphi 0, %s293
      %s311 = sphi 0, %s311
      %s313 = sphi 0, %s311
      %s314 = sphi 0, %s313
      %s328 = sphi 0, %s314
      %s332 = sphi 0, %s332
      %s334 = sphi 0, %s332
      %s335 = sphi 0, %s334
      %s349 = sphi 0, %s335
      %s353 = sphi 0, %s353
      %s355 = sphi 0, %s353
      %s356 = sphi 0, %s355
      %s370 = sphi 0, %s356
      %s374 = sphi 0, %s374
      %s376 = sphi 0, %s374
      %s377 = sphi 0, %s376
      %s391 = sphi 0, %s377
      %s399 = sphi 0, %s401
      %s402 = sphi 0, %s399
      %s403 = sphi 0, %s402
      %s419 = sphi 0, %s403
    $region4: #{tpu_custom_call.1} parent=1 // loop_header_branch
      %35 = sbr.rel (%p33) target = $region8
    $region5: #{tpu_custom_call.1} parent=1 // loop_body
      %s37 = ssub.s32 %s32, 1
      %s38 = ssub.s32 %s32, 2
      %s48 = sadd.s32 1, %s41
      %p49 = scmp.ge.s32.totalorder %s48, 2
      %s50 = scalar_select %p49, 0, %s48
      %s51 = sadd.s32 1, %s40
      %s52 = scalar_select %p49, %s51, %s40
      %p53 = scmp.ge.s32.totalorder %s52, 2
      %s54 = scalar_select %p53, 0, %s52
      %s55 = sadd.s32 1, %s39
      %s56 = scalar_select %p53, %s55, %s39
      %p57 = scmp.ge.s32.totalorder %s56, 2
      %s58 = scalar_select %p57, 0, %s56
      %s59 = ssub.s32 %s39, %s58
      %s60 = ssub.s32 %s40, %s54
      %s61 = sor.u32 %s59, %s60
      %p62 = scmp.eq.s32.totalorder %s61, 0
      %s64 = sadd.s32 %s63, 1
      %s65 = scalar_select %p62, %s63, %s64
      %p68 = pneg %p62
      %p69 = scmp.eq.s32.totalorder %s32, 7
      %p70 = por %p68, %p69
      %p71 = scmp.ne.s32.totalorder %s63, %s66
      %p72 = scmp.eq.s32.totalorder %s32, 0
      %p73 = por %p71, %p72
      %p74 = scmp.ne.s32.totalorder %s63, %s66
      %p75 = scmp.eq.s32.totalorder %s37, 7
      %p76 = por %p74, %p75
      %p77 = scmp.ne.s32.totalorder %s66, %s67
      %p78 = scmp.eq.s32.totalorder %s37, 0
      %p79 = por %p77, %p78
      %p80 = scmp.ne.s32.totalorder %s66, %s67
      %p81 = scmp.eq.s32.totalorder %s38, 7
      %p82 = por %p80, %p81
      %p84 = scmp.ne.s32.totalorder %s67, %s83
      %p85 = scmp.eq.s32.totalorder %s38, 0
      %p86 = por %p84, %p85
      %s87 = ssub.s32 %s39, %s58
      %s88 = ssub.s32 %s41, %s50
      %s89 = sor.u32 %s87, %s88
      %p90 = scmp.eq.s32.totalorder %s89, 0
      %s92 = sadd.s32 %s91, 1
      %s93 = scalar_select %p90, %s91, %s92
      %p96 = pneg %p90
      %p97 = scmp.eq.s32.totalorder %s32, 7
      %p98 = por %p96, %p97
      %p99 = scmp.ne.s32.totalorder %s91, %s94
      %p100 = scmp.eq.s32.totalorder %s32, 0
      %p101 = por %p99, %p100
      %p102 = scmp.ne.s32.totalorder %s91, %s94
      %p103 = scmp.eq.s32.totalorder %s37, 7
      %p104 = por %p102, %p103
      %p105 = scmp.ne.s32.totalorder %s94, %s95
      %p106 = scmp.eq.s32.totalorder %s37, 0
      %p107 = por %p105, %p106
      %p108 = scmp.ne.s32.totalorder %s94, %s95
      %p109 = scmp.eq.s32.totalorder %s38, 7
      %p110 = por %p108, %p109
      %p112 = scmp.ne.s32.totalorder %s95, %s111
      %p113 = scmp.eq.s32.totalorder %s38, 0
      %p114 = por %p112, %p113
      %s115 = ssub.s32 %s39, %s58
      %s116 = ssub.s32 %s41, %s50
      %s117 = sor.u32 %s115, %s116
      %p118 = scmp.eq.s32.totalorder %s117, 0
      %s120 = sadd.s32 %s119, 1
      %s121 = scalar_select %p118, %s119, %s120
      %p124 = pneg %p118
      %p125 = scmp.eq.s32.totalorder %s32, 7
      %p126 = por %p124, %p125
      %p127 = scmp.ne.s32.totalorder %s119, %s122
      %p128 = scmp.eq.s32.totalorder %s32, 0
      %p129 = por %p127, %p128
      %p130 = scmp.ne.s32.totalorder %s119, %s122
      %p131 = scmp.eq.s32.totalorder %s37, 7
      %p132 = por %p130, %p131
      %p133 = scmp.ne.s32.totalorder %s122, %s123
      %p134 = scmp.eq.s32.totalorder %s37, 0
      %p135 = por %p133, %p134
      %p136 = scmp.ne.s32.totalorder %s122, %s123
      %p137 = scmp.eq.s32.totalorder %s38, 7
      %p138 = por %p136, %p137
      %p140 = scmp.ne.s32.totalorder %s123, %s139
      %p141 = scmp.eq.s32.totalorder %s38, 0
      %p142 = por %p140, %p141
      %s144 = sadd.s32 %s143, 1
      %p147 = scmp.eq.s32.totalorder %s32, 7
      %p148 = scmp.ne.s32.totalorder %s143, %s145
      %p149 = scmp.eq.s32.totalorder %s32, 0
      %p150 = por %p148, %p149
      %p151 = scmp.ne.s32.totalorder %s143, %s145
      %p152 = scmp.eq.s32.totalorder %s37, 7
      %p153 = por %p151, %p152
      %p154 = scmp.ne.s32.totalorder %s145, %s146
      %p155 = scmp.eq.s32.totalorder %s37, 0
      %p156 = por %p154, %p155
      %p157 = scmp.ne.s32.totalorder %s145, %s146
      %p158 = scmp.eq.s32.totalorder %s38, 7
      %p159 = por %p157, %p158
      %p161 = scmp.ne.s32.totalorder %s146, %s160
      %p162 = scmp.eq.s32.totalorder %s38, 0
      %p163 = por %p161, %p162
      %s165 = sadd.s32 %s164, 1
      %p168 = scmp.eq.s32.totalorder %s32, 7
      %p169 = scmp.ne.s32.totalorder %s164, %s166
      %p170 = scmp.eq.s32.totalorder %s32, 0
      %p171 = por %p169, %p170
      %p172 = scmp.ne.s32.totalorder %s164, %s166
      %p173 = scmp.eq.s32.totalorder %s37, 7
      %p174 = por %p172, %p173
      %p175 = scmp.ne.s32.totalorder %s166, %s167
      %p176 = scmp.eq.s32.totalorder %s37, 0
      %p177 = por %p175, %p176
      %p178 = scmp.ne.s32.totalorder %s166, %s167
      %p179 = scmp.eq.s32.totalorder %s38, 7
      %p180 = por %p178, %p179
      %p182 = scmp.ne.s32.totalorder %s167, %s181
      %p183 = scmp.eq.s32.totalorder %s38, 0
      %p184 = por %p182, %p183
      %s186 = sadd.s32 %s185, 1
      %p189 = scmp.eq.s32.totalorder %s32, 7
      %p190 = scmp.ne.s32.totalorder %s185, %s187
      %p191 = scmp.eq.s32.totalorder %s32, 0
      %p192 = por %p190, %p191
      %p193 = scmp.ne.s32.totalorder %s185, %s187
      %p194 = scmp.eq.s32.totalorder %s37, 7
      %p195 = por %p193, %p194
      %p196 = scmp.ne.s32.totalorder %s187, %s188
      %p197 = scmp.eq.s32.totalorder %s37, 0
      %p198 = por %p196, %p197
      %p199 = scmp.ne.s32.totalorder %s187, %s188
      %p200 = scmp.eq.s32.totalorder %s38, 7
      %p201 = por %p199, %p200
      %p203 = scmp.ne.s32.totalorder %s188, %s202
      %p204 = scmp.eq.s32.totalorder %s38, 0
      %p205 = por %p203, %p204
      %s207 = sadd.s32 %s206, 1
      %p210 = scmp.eq.s32.totalorder %s32, 7
      %p211 = scmp.ne.s32.totalorder %s206, %s208
      %p212 = scmp.eq.s32.totalorder %s32, 0
      %p213 = por %p211, %p212
      %p214 = scmp.ne.s32.totalorder %s206, %s208
      %p215 = scmp.eq.s32.totalorder %s37, 7
      %p216 = por %p214, %p215
      %p217 = scmp.ne.s32.totalorder %s208, %s209
      %p218 = scmp.eq.s32.totalorder %s37, 0
      %p219 = por %p217, %p218
      %p220 = scmp.ne.s32.totalorder %s208, %s209
      %p221 = scmp.eq.s32.totalorder %s38, 7
      %p222 = por %p220, %p221
      %p224 = scmp.ne.s32.totalorder %s209, %s223
      %p225 = scmp.eq.s32.totalorder %s38, 0
      %p226 = por %p224, %p225
      %s228 = sadd.s32 %s227, 1
      %p231 = scmp.eq.s32.totalorder %s32, 7
      %p232 = scmp.ne.s32.totalorder %s227, %s229
      %p233 = scmp.eq.s32.totalorder %s32, 0
      %p234 = por %p232, %p233
      %p235 = scmp.ne.s32.totalorder %s227, %s229
      %p236 = scmp.eq.s32.totalorder %s37, 7
      %p237 = por %p235, %p236
      %p238 = scmp.ne.s32.totalorder %s229, %s230
      %p239 = scmp.eq.s32.totalorder %s37, 0
      %p240 = por %p238, %p239
      %p241 = scmp.ne.s32.totalorder %s229, %s230
      %p242 = scmp.eq.s32.totalorder %s38, 7
      %p243 = por %p241, %p242
      %p245 = scmp.ne.s32.totalorder %s230, %s244
      %p246 = scmp.eq.s32.totalorder %s38, 0
      %p247 = por %p245, %p246
      %s249 = sadd.s32 %s248, 1
      %p252 = scmp.eq.s32.totalorder %s32, 7
      %p253 = scmp.ne.s32.totalorder %s248, %s250
      %p254 = scmp.eq.s32.totalorder %s32, 0
      %p255 = por %p253, %p254
      %p256 = scmp.ne.s32.totalorder %s248, %s250
      %p257 = scmp.eq.s32.totalorder %s37, 7
      %p258 = por %p256, %p257
      %p259 = scmp.ne.s32.totalorder %s250, %s251
      %p260 = scmp.eq.s32.totalorder %s37, 0
      %p261 = por %p259, %p260
      %p262 = scmp.ne.s32.totalorder %s250, %s251
      %p263 = scmp.eq.s32.totalorder %s38, 7
      %p264 = por %p262, %p263
      %p266 = scmp.ne.s32.totalorder %s251, %s265
      %p267 = scmp.eq.s32.totalorder %s38, 0
      %p268 = por %p266, %p267
      %s270 = sadd.s32 %s269, 1
      %p273 = scmp.eq.s32.totalorder %s32, 7
      %p274 = scmp.ne.s32.totalorder %s269, %s271
      %p275 = scmp.eq.s32.totalorder %s32, 0
      %p276 = por %p274, %p275
      %p277 = scmp.ne.s32.totalorder %s269, %s271
      %p278 = scmp.eq.s32.totalorder %s37, 7
      %p279 = por %p277, %p278
      %p280 = scmp.ne.s32.totalorder %s271, %s272
      %p281 = scmp.eq.s32.totalorder %s37, 0
      %p282 = por %p280, %p281
      %p283 = scmp.ne.s32.totalorder %s271, %s272
      %p284 = scmp.eq.s32.totalorder %s38, 7
      %p285 = por %p283, %p284
      %p287 = scmp.ne.s32.totalorder %s272, %s286
      %p288 = scmp.eq.s32.totalorder %s38, 0
      %p289 = por %p287, %p288
      %s291 = sadd.s32 %s290, 1
      %p294 = scmp.eq.s32.totalorder %s32, 7
      %p295 = scmp.ne.s32.totalorder %s290, %s292
      %p296 = scmp.eq.s32.totalorder %s32, 0
      %p297 = por %p295, %p296
      %p298 = scmp.ne.s32.totalorder %s290, %s292
      %p299 = scmp.eq.s32.totalorder %s37, 7
      %p300 = por %p298, %p299
      %p301 = scmp.ne.s32.totalorder %s292, %s293
      %p302 = scmp.eq.s32.totalorder %s37, 0
      %p303 = por %p301, %p302
      %p304 = scmp.ne.s32.totalorder %s292, %s293
      %p305 = scmp.eq.s32.totalorder %s38, 7
      %p306 = por %p304, %p305
      %p308 = scmp.ne.s32.totalorder %s293, %s307
      %p309 = scmp.eq.s32.totalorder %s38, 0
      %p310 = por %p308, %p309
      %s312 = sadd.s32 %s311, 1
      %p315 = scmp.eq.s32.totalorder %s32, 7
      %p316 = scmp.ne.s32.totalorder %s311, %s313
      %p317 = scmp.eq.s32.totalorder %s32, 0
      %p318 = por %p316, %p317
      %p319 = scmp.ne.s32.totalorder %s311, %s313
      %p320 = scmp.eq.s32.totalorder %s37, 7
      %p321 = por %p319, %p320
      %p322 = scmp.ne.s32.totalorder %s313, %s314
      %p323 = scmp.eq.s32.totalorder %s37, 0
      %p324 = por %p322, %p323
      %p325 = scmp.ne.s32.totalorder %s313, %s314
      %p326 = scmp.eq.s32.totalorder %s38, 7
      %p327 = por %p325, %p326
      %p329 = scmp.ne.s32.totalorder %s314, %s328
      %p330 = scmp.eq.s32.totalorder %s38, 0
      %p331 = por %p329, %p330
      %s333 = sadd.s32 %s332, 1
      %p336 = scmp.eq.s32.totalorder %s32, 7
      %p337 = scmp.ne.s32.totalorder %s332, %s334
      %p338 = scmp.eq.s32.totalorder %s32, 0
      %p339 = por %p337, %p338
      %p340 = scmp.ne.s32.totalorder %s332, %s334
      %p341 = scmp.eq.s32.totalorder %s37, 7
      %p342 = por %p340, %p341
      %p343 = scmp.ne.s32.totalorder %s334, %s335
      %p344 = scmp.eq.s32.totalorder %s37, 0
      %p345 = por %p343, %p344
      %p346 = scmp.ne.s32.totalorder %s334, %s335
      %p347 = scmp.eq.s32.totalorder %s38, 7
      %p348 = por %p346, %p347
      %p350 = scmp.ne.s32.totalorder %s335, %s349
      %p351 = scmp.eq.s32.totalorder %s38, 0
      %p352 = por %p350, %p351
      %s354 = sadd.s32 %s353, 1
      %p357 = scmp.eq.s32.totalorder %s32, 7
      %p358 = scmp.ne.s32.totalorder %s353, %s355
      %p359 = scmp.eq.s32.totalorder %s32, 0
      %p360 = por %p358, %p359
      %p361 = scmp.ne.s32.totalorder %s353, %s355
      %p362 = scmp.eq.s32.totalorder %s37, 7
      %p363 = por %p361, %p362
      %p364 = scmp.ne.s32.totalorder %s355, %s356
      %p365 = scmp.eq.s32.totalorder %s37, 0
      %p366 = por %p364, %p365
      %p367 = scmp.ne.s32.totalorder %s355, %s356
      %p368 = scmp.eq.s32.totalorder %s38, 7
      %p369 = por %p367, %p368
      %p371 = scmp.ne.s32.totalorder %s356, %s370
      %p372 = scmp.eq.s32.totalorder %s38, 0
      %p373 = por %p371, %p372
      %s375 = sadd.s32 %s374, 1
      %p378 = scmp.eq.s32.totalorder %s32, 7
      %p379 = scmp.ne.s32.totalorder %s374, %s376
      %p380 = scmp.eq.s32.totalorder %s32, 0
      %p381 = por %p379, %p380
      %p382 = scmp.ne.s32.totalorder %s374, %s376
      %p383 = scmp.eq.s32.totalorder %s37, 7
      %p384 = por %p382, %p383
      %p385 = scmp.ne.s32.totalorder %s376, %s377
      %p386 = scmp.eq.s32.totalorder %s37, 0
      %p387 = por %p385, %p386
      %p388 = scmp.ne.s32.totalorder %s376, %s377
      %p389 = scmp.eq.s32.totalorder %s38, 7
      %p390 = por %p388, %p389
      %p392 = scmp.ne.s32.totalorder %s377, %s391
      %p393 = scmp.eq.s32.totalorder %s38, 0
      %p394 = por %p392, %p393
      %s395 = ssub.s32 %s39, %s58
      %s396 = ssub.s32 %s40, %s54
      %s397 = sor.u32 %s395, %s396
      %p398 = scmp.eq.s32.totalorder %s397, 0
      %s400 = sadd.s32 %s399, 1
      %s401 = scalar_select %p398, %s399, %s400
      %p404 = pneg %p398
      %p405 = scmp.eq.s32.totalorder %s32, 7
      %p406 = por %p404, %p405
      %p407 = scmp.ne.s32.totalorder %s399, %s402
      %p408 = scmp.eq.s32.totalorder %s32, 0
      %p409 = por %p407, %p408
      %p410 = scmp.ne.s32.totalorder %s399, %s402
      %p411 = scmp.eq.s32.totalorder %s37, 7
      %p412 = por %p410, %p411
      %p413 = scmp.ne.s32.totalorder %s402, %s403
      %p414 = scmp.eq.s32.totalorder %s37, 0
      %p415 = por %p413, %p414
      %p416 = scmp.ne.s32.totalorder %s402, %s403
      %p417 = scmp.eq.s32.totalorder %s38, 7
      %p418 = por %p416, %p417
      %p420 = scmp.ne.s32.totalorder %s403, %s419
      %p421 = scmp.eq.s32.totalorder %s38, 0
      %p422 = por %p420, %p421
      %p423 = scmp.le.s32.totalorder 1, %s32
      %p424 = scmp.lt.s32.totalorder %s32, 9
      %p425 = pnand %p423, %p424
      %p426 = pneg %p425
      // Predicated region
      $region9: #{tpu_custom_call.1} parent=5 // pred_check
        _
      $region10: #{tpu_custom_call.1} parent=5 // pred_check_branch
        %428 = sbr.rel (%p425) target = $region12
      $region11: #{tpu_custom_call.1} parent=5 // pred_region
        %s429 = ssub.s32 %s32, 1
        // Predicated region
        $region13: #{tpu_custom_call.1} parent=11 // pred_check
          %p430 = pneg %p156
        $region14: #{tpu_custom_call.1} parent=11 // pred_check_branch
          %432 = sbr.rel (%p430) target = $region16
        $region15: #{tpu_custom_call.1} parent=11 // pred_region
          %s434 = ssub.s32 1024, 1024
          %435 = vsyncadd [#allocation13], %s434
          %s436 = sshll.u32 [#allocation12], 4
          %s437 = int_to_ptr.vmem [resolvable:$true] %s436
          %442 = dma.hbm_to_vmem [thread:$0]  %s3, 1024, %s437, [#allocation13], 64, 64, 4
        $region16: #{tpu_custom_call.1} parent=11 // pred_fallthru
          _
        // Predicated region
        $region17: #{tpu_custom_call.1} parent=11 // pred_check
          %p443 = pneg %p177
        $region18: #{tpu_custom_call.1} parent=11 // pred_check_branch
          %445 = sbr.rel (%p443) target = $region20
        $region19: #{tpu_custom_call.1} parent=11 // pred_region
          _
        $region20: #{tpu_custom_call.1} parent=11 // pred_fallthru
          _
        // Predicated region
        $region21: #{tpu_custom_call.1} parent=11 // pred_check
          %p446 = pneg %p198
        $region22: #{tpu_custom_call.1} parent=11 // pred_check_branch
          %448 = sbr.rel (%p446) target = $region24
        $region23: #{tpu_custom_call.1} parent=11 // pred_region
          %s450 = ssub.s32 1024, 1024
          %451 = vsyncadd [#allocation13], %s450
          %s452 = sshll.u32 [#allocation14], 4
          %s453 = int_to_ptr.vmem [resolvable:$true] %s452
          %458 = dma.hbm_to_vmem [thread:$0]  %s5, 1024, %s453, [#allocation13], 64, 64, 4
        $region24: #{tpu_custom_call.1} parent=11 // pred_fallthru
          _
        // Predicated region
        $region25: #{tpu_custom_call.1} parent=11 // pred_check
          %p459 = pneg %p219
        $region26: #{tpu_custom_call.1} parent=11 // pred_check_branch
          %461 = sbr.rel (%p459) target = $region28
        $region27: #{tpu_custom_call.1} parent=11 // pred_region
          _
        $region28: #{tpu_custom_call.1} parent=11 // pred_fallthru
          _
        // Predicated region
        $region29: #{tpu_custom_call.1} parent=11 // pred_check
          %p462 = pneg %p240
        $region30: #{tpu_custom_call.1} parent=11 // pred_check_branch
          %464 = sbr.rel (%p462) target = $region32
        $region31: #{tpu_custom_call.1} parent=11 // pred_region
          _
        $region32: #{tpu_custom_call.1} parent=11 // pred_fallthru
          _
        // Predicated region
        $region33: #{tpu_custom_call.1} parent=11 // pred_check
          %p465 = pneg %p261
        $region34: #{tpu_custom_call.1} parent=11 // pred_check_branch
          %467 = sbr.rel (%p465) target = $region36
        $region35: #{tpu_custom_call.1} parent=11 // pred_region
          _
        $region36: #{tpu_custom_call.1} parent=11 // pred_fallthru
          _
        // Predicated region
        $region37: #{tpu_custom_call.1} parent=11 // pred_check
          %p468 = pneg %p282
        $region38: #{tpu_custom_call.1} parent=11 // pred_check_branch
          %470 = sbr.rel (%p468) target = $region40
        $region39: #{tpu_custom_call.1} parent=11 // pred_region
          %s472 = ssub.s32 2048, 2048
          %473 = vsyncadd [#allocation16], %s472
          %s474 = sshll.u32 [#allocation15], 4
          %s475 = int_to_ptr.vmem [resolvable:$true] %s474
          %480 = dma.hbm_to_vmem [thread:$0]  %s9, 2048, %s475, [#allocation16], 128, 128, 8
        $region40: #{tpu_custom_call.1} parent=11 // pred_fallthru
          _
        // Predicated region
        $region41: #{tpu_custom_call.1} parent=11 // pred_check
          %p481 = pneg %p303
        $region42: #{tpu_custom_call.1} parent=11 // pred_check_branch
          %483 = sbr.rel (%p481) target = $region44
        $region43: #{tpu_custom_call.1} parent=11 // pred_region
          _
        $region44: #{tpu_custom_call.1} parent=11 // pred_fallthru
          _
        // Predicated region
        $region45: #{tpu_custom_call.1} parent=11 // pred_check
          %p484 = pneg %p324
        $region46: #{tpu_custom_call.1} parent=11 // pred_check_branch
          %486 = sbr.rel (%p484) target = $region48
        $region47: #{tpu_custom_call.1} parent=11 // pred_region
          %s488 = ssub.s32 2048, 2048
          %489 = vsyncadd [#allocation16], %s488
          %s490 = sshll.u32 [#allocation17], 4
          %s491 = int_to_ptr.vmem [resolvable:$true] %s490
          %496 = dma.hbm_to_vmem [thread:$0]  %s11, 2048, %s491, [#allocation16], 64, 64, 4
        $region48: #{tpu_custom_call.1} parent=11 // pred_fallthru
          _
        // Predicated region
        $region49: #{tpu_custom_call.1} parent=11 // pred_check
          %p497 = pneg %p345
        $region50: #{tpu_custom_call.1} parent=11 // pred_check_branch
          %499 = sbr.rel (%p497) target = $region52
        $region51: #{tpu_custom_call.1} parent=11 // pred_region
          _
        $region52: #{tpu_custom_call.1} parent=11 // pred_fallthru
          _
        // Predicated region
        $region53: #{tpu_custom_call.1} parent=11 // pred_check
          %p500 = pneg %p366
        $region54: #{tpu_custom_call.1} parent=11 // pred_check_branch
          %502 = sbr.rel (%p500) target = $region56
        $region55: #{tpu_custom_call.1} parent=11 // pred_region
          _
        $region56: #{tpu_custom_call.1} parent=11 // pred_fallthru
          _
        // Predicated region
        $region57: #{tpu_custom_call.1} parent=11 // pred_check
          %p503 = pneg %p387
        $region58: #{tpu_custom_call.1} parent=11 // pred_check_branch
          %505 = sbr.rel (%p503) target = $region60
        $region59: #{tpu_custom_call.1} parent=11 // pred_region
          _
        $region60: #{tpu_custom_call.1} parent=11 // pred_fallthru
          _
      $region12: #{tpu_custom_call.1} parent=5 // pred_fallthru
        _
      %p506 = scmp.lt.s32.totalorder %s32, 8
      // Predicated region
      $region61: #{tpu_custom_call.1} parent=5 // pred_check
        %p507 = pneg %p506
      $region62: #{tpu_custom_call.1} parent=5 // pred_check_branch
        %509 = sbr.rel (%p507) target = $region64
      $region63: #{tpu_custom_call.1} parent=5 // pred_region
        // Predicated region
        $region65: #{tpu_custom_call.1} parent=63 // pred_check
          %p510 = pneg %p73
        $region66: #{tpu_custom_call.1} parent=63 // pred_check_branch
          %512 = sbr.rel (%p510) target = $region68
        $region67: #{tpu_custom_call.1} parent=63 // pred_region
          %s513 = sand.u32 %s63, 1
          %s514 = scalar_lea.sflag [#allocation7], %s513
          %s515 = sand.u32 %s63, 1
          %s516 = smul.addr %s515, 16
          %s517 = scalar_lea.vmem [#allocation6], %s516
          %s518 = smul.u32 2, %s40
          %s520 = ssub.s32 256, 256
          %521 = vsyncadd %s514, %s520
          %s522 = smul.addr %s39, 4
          %s523 = sadd.s32 %s518, %s522
          %s524 = smul.addr %s523, 128
          %s525 = scalar_lea.hbm %s0, %s524
          %s526 = sshll.u32 %s517, 4
          %s527 = int_to_ptr.vmem [resolvable:$true] %s526
          %532 = dma.hbm_to_vmem [thread:$0]  %s525, 256, %s527, %s514, 128, 128, 8
        $region68: #{tpu_custom_call.1} parent=63 // pred_fallthru
          _
        // Predicated region
        $region69: #{tpu_custom_call.1} parent=63 // pred_check
          %p533 = pneg %p101
        $region70: #{tpu_custom_call.1} parent=63 // pred_check_branch
          %535 = sbr.rel (%p533) target = $region72
        $region71: #{tpu_custom_call.1} parent=63 // pred_region
          %s536 = sand.u32 %s32, 1
          %s537 = scalar_lea.sflag [#allocation10], %s536
          %s538 = sand.u32 %s91, 1
          %s539 = smul.addr %s538, 8
          %s540 = scalar_lea.vmem [#allocation9], %s539
          %s541 = smul.u32 2, %s41
          %s543 = ssub.s32 128, 128
          %544 = vsyncadd %s537, %s543
          %s545 = smul.addr %s39, 4
          %s546 = sadd.s32 %s541, %s545
          %s547 = smul.addr %s546, 64
          %s548 = scalar_lea.hbm %s1, %s547
          %s549 = sshll.u32 %s540, 4
          %s550 = int_to_ptr.vmem [resolvable:$true] %s549
          %555 = dma.hbm_to_vmem [thread:$0]  %s548, 128, %s550, %s537, 64, 64, 4
        $region72: #{tpu_custom_call.1} parent=63 // pred_fallthru
          _
        // Predicated region
        $region73: #{tpu_custom_call.1} parent=63 // pred_check
          %p556 = pneg %p129
        $region74: #{tpu_custom_call.1} parent=63 // pred_check_branch
          %558 = sbr.rel (%p556) target = $region76
        $region75: #{tpu_custom_call.1} parent=63 // pred_region
          %s559 = sand.u32 %s32, 1
          %s560 = scalar_lea.sflag [#allocation10], %s559
          %s561 = sand.u32 %s119, 1
          %s562 = smul.addr %s561, 8
          %s563 = scalar_lea.vmem [#allocation11], %s562
          %s564 = smul.u32 2, %s41
          %s566 = ssub.s32 128, 128
          %567 = vsyncadd %s560, %s566
          %s568 = smul.addr %s39, 4
          %s569 = sadd.s32 %s564, %s568
          %s570 = smul.addr %s569, 64
          %s571 = scalar_lea.hbm %s2, %s570
          %s572 = sshll.u32 %s563, 4
          %s573 = int_to_ptr.vmem [resolvable:$true] %s572
          %578 = dma.hbm_to_vmem [thread:$0]  %s571, 128, %s573, %s560, 64, 64, 4
        $region76: #{tpu_custom_call.1} parent=63 // pred_fallthru
          _
      $region64: #{tpu_custom_call.1} parent=5 // pred_fallthru
        _
      %p579 = scmp.le.s32.totalorder 1, %s32
      %p580 = scmp.lt.s32.totalorder %s32, 9
      %p581 = pnand %p579, %p580
      %p582 = pneg %p581
      // Predicated region
      $region77: #{tpu_custom_call.1} parent=5 // pred_check
        _
      $region78: #{tpu_custom_call.1} parent=5 // pred_check_branch
        %584 = sbr.rel (%p581) target = $region80
      $region79: #{tpu_custom_call.1} parent=5 // pred_region
        %s585 = ssub.s32 %s32, 1
        %s586 = sand.u32 %s66, 1
        %s587 = scalar_lea.sflag [#allocation7], %s586
        %s588 = sand.u32 %s66, 1
        %s589 = smul.addr %s588, 16
        %s590 = scalar_lea.vmem [#allocation6], %s589
        // Predicated region
        $region81: #{tpu_custom_call.1} parent=79 // pred_check
          %p591 = pneg %p79
        $region82: #{tpu_custom_call.1} parent=79 // pred_check_branch
          %593 = sbr.rel (%p591) target = $region84
        $region83: #{tpu_custom_call.1} parent=79 // pred_region
          %594 = dma.done %s587, 256
        $region84: #{tpu_custom_call.1} parent=79 // pred_fallthru
          _
        %s595 = sand.u32 %s37, 1
        %s596 = scalar_lea.sflag [#allocation10], %s595
        %s597 = sand.u32 %s94, 1
        %s598 = smul.addr %s597, 8
        %s599 = scalar_lea.vmem [#allocation9], %s598
        // Predicated region
        $region85: #{tpu_custom_call.1} parent=79 // pred_check
          %p600 = pneg %p107
        $region86: #{tpu_custom_call.1} parent=79 // pred_check_branch
          %602 = sbr.rel (%p600) target = $region88
        $region87: #{tpu_custom_call.1} parent=79 // pred_region
          %603 = dma.done %s596, 128
        $region88: #{tpu_custom_call.1} parent=79 // pred_fallthru
          _
        %s604 = sand.u32 %s37, 1
        %s605 = scalar_lea.sflag [#allocation10], %s604
        %s606 = sand.u32 %s122, 1
        %s607 = smul.addr %s606, 8
        %s608 = scalar_lea.vmem [#allocation11], %s607
        // Predicated region
        $region89: #{tpu_custom_call.1} parent=79 // pred_check
          %p609 = pneg %p135
        $region90: #{tpu_custom_call.1} parent=79 // pred_check_branch
          %611 = sbr.rel (%p609) target = $region92
        $region91: #{tpu_custom_call.1} parent=79 // pred_region
          %612 = dma.done %s605, 128
        $region92: #{tpu_custom_call.1} parent=79 // pred_fallthru
          _
        // Predicated region
        $region93: #{tpu_custom_call.1} parent=79 // pred_check
          %p613 = pneg %p156
        $region94: #{tpu_custom_call.1} parent=79 // pred_check_branch
          %615 = sbr.rel (%p613) target = $region96
        $region95: #{tpu_custom_call.1} parent=79 // pred_region
          %616 = dma.done [#allocation13], 1024
        $region96: #{tpu_custom_call.1} parent=79 // pred_fallthru
          _
        // Predicated region
        $region97: #{tpu_custom_call.1} parent=79 // pred_check
          %p617 = pneg %p198
        $region98: #{tpu_custom_call.1} parent=79 // pred_check_branch
          %619 = sbr.rel (%p617) target = $region100
        $region99: #{tpu_custom_call.1} parent=79 // pred_region
          %620 = dma.done [#allocation13], 1024
        $region100: #{tpu_custom_call.1} parent=79 // pred_fallthru
          _
        // Predicated region
        $region101: #{tpu_custom_call.1} parent=79 // pred_check
          %p621 = pneg %p282
        $region102: #{tpu_custom_call.1} parent=79 // pred_check_branch
          %623 = sbr.rel (%p621) target = $region104
        $region103: #{tpu_custom_call.1} parent=79 // pred_region
          %624 = dma.done [#allocation16], 2048
        $region104: #{tpu_custom_call.1} parent=79 // pred_fallthru
          _
        // Predicated region
        $region105: #{tpu_custom_call.1} parent=79 // pred_check
          %p625 = pneg %p324
        $region106: #{tpu_custom_call.1} parent=79 // pred_check_branch
          %627 = sbr.rel (%p625) target = $region108
        $region107: #{tpu_custom_call.1} parent=79 // pred_region
          %628 = dma.done [#allocation16], 2048
        $region108: #{tpu_custom_call.1} parent=79 // pred_fallthru
          _
        %s629 = sand.u32 %s66, 1
        %s630 = scalar_lea.sflag [#allocation7], %s629
        %s631 = sand.u32 %s66, 1
        %s632 = smul.addr %s631, 16
        %s633 = scalar_lea.vmem [#allocation6], %s632
        %p634 = pneg %p79
        %p635 = pneg %p76
        %s636 = sand.u32 %s37, 1
        %s637 = scalar_lea.sflag [#allocation10], %s636
        %s638 = sand.u32 %s94, 1
        %s639 = smul.addr %s638, 8
        %s640 = scalar_lea.vmem [#allocation9], %s639
        %p641 = pneg %p107
        %p642 = pneg %p104
        %s643 = sand.u32 %s37, 1
        %s644 = scalar_lea.sflag [#allocation10], %s643
        %s645 = sand.u32 %s122, 1
        %s646 = smul.addr %s645, 8
        %s647 = scalar_lea.vmem [#allocation11], %s646
        %p648 = pneg %p135
        %p649 = pneg %p132
        %p650 = pneg %p156
        %p651 = pneg %p153
        %p652 = pneg %p177
        %p653 = pneg %p174
        %p654 = pneg %p198
        %p655 = pneg %p195
        %p656 = pneg %p219
        %p657 = pneg %p216
        %p658 = pneg %p240
        %p659 = pneg %p237
        %p660 = pneg %p261
        %p661 = pneg %p258
        %p662 = pneg %p282
        %p663 = pneg %p279
        %p664 = pneg %p303
        %p665 = pneg %p300
        %p666 = pneg %p324
        %p667 = pneg %p321
        %p668 = pneg %p345
        %p669 = pneg %p342
        %p670 = pneg %p366
        %p671 = pneg %p363
        %p672 = pneg %p387
        %p673 = pneg %p384
        %p674 = pneg %p415
        %p675 = pneg %p412
        %s676 = sand.u32 %s402, 1
        %s677 = scalar_lea.sflag [#allocation8], %s676
        %s678 = sand.u32 %s402, 1
        %s679 = smul.addr %s678, 16
        %s680 = scalar_lea.vmem [#allocation18], %s679
        %s681 = smul.u32 2, %s43
        %s682 = smul.u32 2, %s44
        %s683 = smul.u32 2, %s44
        %s684 = smul.u32 2, %s43
        %p686 = scmp.eq.s32.totalorder %s44, 0
        // Predicated region
        $region109: #{tpu_custom_call.1} parent=79 // pred_check
          %p687 = pneg %p686
        $region110: #{tpu_custom_call.1} parent=79 // pred_check_branch
          %689 = sbr.rel (%p687) target = $region112
        $region111: #{tpu_custom_call.1} parent=79 // pred_region
          %v690 = vld [vmem:[%s590] sm:$0xff]
          %v691 = vld [vmem:[%s590 + $0x8] sm:$0xff]
          %v692 = vpack.c.bf16 %v691, %v690
          %v693 = vld [vmem:[#allocation12] sm:$0xf]
          %v694 = vld [vmem:[#allocation12 + $0x4] sm:$0xf]
          %v695 = vld [vmem:[#allocation12 + $0x8] sm:$0xf]
          %v696 = vld [vmem:[#allocation12 + $0xc] sm:$0xf]
          %v697 = vld [vmem:[#allocation12 + $0x10] sm:$0xf]
          %v698 = vld [vmem:[#allocation12 + $0x14] sm:$0xf]
          %v699 = vld [vmem:[#allocation12 + $0x18] sm:$0xf]
          %v700 = vld [vmem:[#allocation12 + $0x1c] sm:$0xf]
          %v701 = vld [vmem:[#allocation12 + $0x20] sm:$0xf]
          %v702 = vld [vmem:[#allocation12 + $0x24] sm:$0xf]
          %v703 = vld [vmem:[#allocation12 + $0x28] sm:$0xf]
          %v704 = vld [vmem:[#allocation12 + $0x2c] sm:$0xf]
          %v705 = vld [vmem:[#allocation12 + $0x30] sm:$0xf]
          %v706 = vld [vmem:[#allocation12 + $0x34] sm:$0xf]
          %v707 = vld [vmem:[#allocation12 + $0x38] sm:$0xf]
          %v708 = vld [vmem:[#allocation12 + $0x3c] sm:$0xf]
          %v709 = vld [vmem:[%s4] sm:$0x1]
          %v711 = vlaneseq
          %v712 = vshrl.u32 %v711, 7
          %v713 = vsub.s32 0, %v712
          %v714 = vrot.slane %v709, %v713
          %v732 = vunpack.c.l.b16 %v693
          %v733 = vunpack.c.l.b16 %v694
          %v734 = vunpack.c.l.b16 %v695
          %v735 = vunpack.c.l.b16 %v696
          %v736 = vunpack.c.l.b16 %v697
          %v737 = vunpack.c.l.b16 %v698
          %v738 = vunpack.c.l.b16 %v699
          %v739 = vunpack.c.l.b16 %v700
          %v740 = vunpack.c.l.b16 %v701
          %v741 = vunpack.c.l.b16 %v702
          %v742 = vunpack.c.l.b16 %v703
          %v743 = vunpack.c.l.b16 %v704
          %v744 = vunpack.c.l.b16 %v705
          %v745 = vunpack.c.l.b16 %v706
          %v746 = vunpack.c.l.b16 %v707
          %v747 = vunpack.c.l.b16 %v708
          %v748 = vpack.c.b16 %v733, %v732
          %v749 = vpack.c.b16 %v735, %v734
          %v750 = vpack.c.b16 %v737, %v736
          %v751 = vpack.c.b16 %v739, %v738
          %v752 = vpack.c.b16 %v741, %v740
          %v753 = vpack.c.b16 %v743, %v742
          %v754 = vpack.c.b16 %v745, %v744
          %v755 = vpack.c.b16 %v747, %v746
          %764 = vmatprep.subr.bf16.mxu0 0
          %765 = vmatpush1.bf16.msra.mxu0 %v748
          %766 = vmatprep.subr.bf16.mxu0 0
          %767 = vmatpush1.bf16.msra.mxu0 %v749
          %768 = vmatprep.subr.bf16.mxu0 0
          %769 = vmatpush1.bf16.msra.mxu0 %v750
          %770 = vmatprep.subr.bf16.mxu0 0
          %771 = vmatpush1.bf16.msra.mxu0 %v751
          %772 = vmatprep.subr.bf16.mxu0 0
          %773 = vmatpush1.bf16.msra.mxu0 %v752
          %774 = vmatprep.subr.bf16.mxu0 0
          %775 = vmatpush1.bf16.msra.mxu0 %v753
          %776 = vmatprep.subr.bf16.mxu0 0
          %777 = vmatpush1.bf16.msra.mxu0 %v754
          %778 = vmatprep.subr.bf16.mxu0 0
          %779 = vmatpush1.bf16.msra.mxu0 %v755
          %780 = vmatprep.subr.bf16.mxu0 0
          %781 = vmatpush1.bf16.msra.mxu0 0
          %782 = vmatprep.subr.bf16.mxu0 0
          %783 = vmatpush1.bf16.msra.mxu0 0
          %784 = vmatprep.subr.bf16.mxu0 0
          %785 = vmatpush1.bf16.msra.mxu0 0
          %786 = vmatprep.subr.bf16.mxu0 0
          %787 = vmatpush1.bf16.msra.mxu0 0
          %788 = vmatprep.subr.bf16.mxu0 0
          %789 = vmatpush1.bf16.msra.mxu0 0
          %790 = vmatprep.subr.bf16.mxu0 0
          %791 = vmatpush1.bf16.msra.mxu0 0
          %792 = vmatprep.subr.bf16.mxu0 0
          %793 = vmatpush1.bf16.msra.mxu0 0
          %794 = vmatprep.subr.bf16.mxu0 0
          %795 = vmatpush1.bf16.msra.mxu0 0
          %796 = vmatprep.mubr.bf16.mxu0 0
          %797 = vmatmul.mubr.bf16.gmra.mrb[0].mxu0 %v692
          %v798 = vpop.f32.mrb[0].mxu0
          %v799 = vadd.f32 %v714, %v798
          %v800 = vpop.f32.mrb[0].mxu0
          %v801 = vpop.f32.mrb[0].mxu0
          %v802 = vadd.f32 %v714, %v801
          %v803 = vpop.f32.mrb[0].mxu0
          %804 = vdwg.mxu0
          %v805 = vmul.f32 %v799, 0.17677669
          %v806 = vmul.f32 %v802, 0.17677669
          %v807 = vpack.c.bf16 %v806, %v805
          %808 = vst [vmem:[#allocation2] sm:$0xff] %v807
          %vm809 = vcmask 31744
          %810 = vst.msk [vmem:[#allocation3] sm:$0xff] %vm809, -inf
          %811 = vst.msk [vmem:[#allocation3 + $0x8] sm:$0xff] %vm809, -inf
          %812 = vst.msk [vmem:[#allocation4] sm:$0xff] %vm809, 0.0
          %813 = vst.msk [vmem:[#allocation4 + $0x8] sm:$0xff] %vm809, 0.0
          %814 = vst [vmem:[#allocation5] sm:$0xff] 0.0
          %815 = vst [vmem:[#allocation5 + $0x8] sm:$0xff] 0.0
        $region112: #{tpu_custom_call.1} parent=79 // pred_fallthru
          _
        %v816 = vld [vmem:[#allocation2] sm:$0xff]
        %v817 = vld [vmem:[%s599] sm:$0xf]
        %v818 = vld [vmem:[%s599 + $0x4] sm:$0xf]
        %v819 = vld [vmem:[%s608] sm:$0xf]
        %v820 = vld [vmem:[%s608 + $0x4] sm:$0xf]
        %v823 = vunpack.c.l.b16 %v817
        %v824 = vunpack.c.l.b16 %v818
        %v825 = vpack.c.b16 %v824, %v823
        %vm826 = vcmask 261120
        %v828 = vsel %vm826, %v816, 0
        %v831 = vsel %vm826, %v825, 0
        %833 = vmatprep.subr.bf16.mxu0 0
        %834 = vmatpush1.bf16.xpose.msra.mxu0 %v831
        %835 = vmatprep.subr.bf16.mxu0 0
        %836 = vmatpush1.bf16.xpose.msra.mxu0 0
        %837 = vmatprep.subr.bf16.mxu0 0
        %838 = vmatpush1.bf16.xpose.msra.mxu0 0
        %839 = vmatprep.subr.bf16.mxu0 0
        %840 = vmatpush1.bf16.xpose.msra.mxu0 0
        %841 = vmatprep.subr.bf16.mxu0 0
        %842 = vmatpush1.bf16.xpose.msra.mxu0 0
        %843 = vmatprep.subr.bf16.mxu0 0
        %844 = vmatpush1.bf16.xpose.msra.mxu0 0
        %845 = vmatprep.subr.bf16.mxu0 0
        %846 = vmatpush1.bf16.xpose.msra.mxu0 0
        %847 = vmatprep.subr.bf16.mxu0 0
        %848 = vmatpush1.bf16.xpose.msra.mxu0 0
        %849 = vmatprep.subr.bf16.mxu0 0
        %850 = vmatpush1.bf16.xpose.msra.mxu0 0
        %851 = vmatprep.subr.bf16.mxu0 0
        %852 = vmatpush1.bf16.xpose.msra.mxu0 0
        %853 = vmatprep.subr.bf16.mxu0 0
        %854 = vmatpush1.bf16.xpose.msra.mxu0 0
        %855 = vmatprep.subr.bf16.mxu0 0
        %856 = vmatpush1.bf16.xpose.msra.mxu0 0
        %857 = vmatprep.subr.bf16.mxu0 0
        %858 = vmatpush1.bf16.xpose.msra.mxu0 0
        %859 = vmatprep.subr.bf16.mxu0 0
        %860 = vmatpush1.bf16.xpose.msra.mxu0 0
        %861 = vmatprep.subr.bf16.mxu0 0
        %862 = vmatpush1.bf16.xpose.msra.mxu0 0
        %863 = vmatprep.subr.bf16.mxu0 0
        %864 = vmatpush1.bf16.xpose.msra.mxu0 0
        %865 = vmatprep.mubr.bf16.mxu0 0
        %866 = vmatmul.mubr.bf16.gmra.mrb[0].mxu0 %v828
        %v867 = vpop.f32.mrb[0].mxu0
        %v868 = vadd.f32 0.0, %v867
        %v869 = vpop.f32.mrb[0].mxu0
        %v870 = vpop.f32.mrb[0].mxu0
        %v871 = vadd.f32 0.0, %v870
        %v872 = vpop.f32.mrb[0].mxu0
        %873 = vdwg.mxu0
        %v874 = vld [vmem:[#allocation3] sm:$0xff]
        %v875 = vld [vmem:[#allocation3 + $0x8] sm:$0xff]
        %vm876 = vcmask 130048
        %v877 = vsel %vm876, %v868, -inf
        %878 = vmax.xlane.f32.xlu0 %v877
        %v879 = vpop.xlane.xlu0 %878
        %v880 = vsel %vm876, %v871, -inf
        %881 = vmax.xlane.f32.xlu0 %v880
        %v882 = vpop.xlane.xlu0 %881
        %v883 = vmax.f32 %v874, %v879
        %v884 = vmax.f32 %v875, %v882
        %v885 = vsub.f32 %v874, %v883
        %v886 = vsub.f32 %v875, %v884
        %v887 = vmul.f32 %v885, 1.442695
        %v888 = vpow.pop %v887
        %v889 = vmul.f32 %v886, 1.442695
        %v890 = vpow.pop %v889
        %892 = vset.pattern.permute.xlu0 0
        %893 = vperm.xlu0 %892, %v883
        %v894 = vpop.permute.xlu0 %893
        %897 = vset.pattern.permute.xlu0 0
        %898 = vperm.xlu0 %897, %v884
        %v899 = vpop.permute.xlu0 %898
        %v901 = vsub.f32 %v868, %v894
        %v902 = vsub.f32 %v871, %v899
        %v903 = vmul.f32 %v901, 1.442695
        %v904 = vpow.pop %v903
        %v905 = vmul.f32 %v902, 1.442695
        %v906 = vpow.pop %v905
        %v907 = vld [vmem:[#allocation4] sm:$0xff]
        %v908 = vld [vmem:[#allocation4 + $0x8] sm:$0xff]
        %v909 = vmul.f32 %v888, %v907
        %v910 = vmul.f32 %v890, %v908
        %v911 = vsel %vm876, %v904, 0.0
        %912 = vadd.xlane.f32.xlu0 %v911
        %v913 = vpop.xlane.xlu0 %912
        %v914 = vsel %vm876, %v906, 0.0
        %915 = vadd.xlane.f32.xlu0 %v914
        %v916 = vpop.xlane.xlu0 %915
        %v917 = vadd.f32 %v909, %v913
        %v918 = vadd.f32 %v910, %v916
        %vm919 = vcmask 7168
        %920 = vst.msk [vmem:[#allocation4] sm:$0xff] %vm919, %v917
        %921 = vst.msk [vmem:[#allocation4 + $0x8] sm:$0xff] %vm919, %v918
        %v922 = vpack.c.bf16 %v906, %v904
        %v925 = vunpack.c.l.b16 %v819
        %v926 = vunpack.c.l.b16 %v820
        %v927 = vpack.c.b16 %v926, %v925
        %v930 = vsel %vm876, %v922, 0
        %932 = vmatprep.subr.bf16.mxu0 0
        %933 = vmatpush1.bf16.msra.mxu0 %v927
        %934 = vmatprep.subr.bf16.mxu0 0
        %935 = vmatpush1.bf16.msra.mxu0 0
        %936 = vmatprep.subr.bf16.mxu0 0
        %937 = vmatpush1.bf16.msra.mxu0 0
        %938 = vmatprep.subr.bf16.mxu0 0
        %939 = vmatpush1.bf16.msra.mxu0 0
        %940 = vmatprep.subr.bf16.mxu0 0
        %941 = vmatpush1.bf16.msra.mxu0 0
        %942 = vmatprep.subr.bf16.mxu0 0
        %943 = vmatpush1.bf16.msra.mxu0 0
        %944 = vmatprep.subr.bf16.mxu0 0
        %945 = vmatpush1.bf16.msra.mxu0 0
        %946 = vmatprep.subr.bf16.mxu0 0
        %947 = vmatpush1.bf16.msra.mxu0 0
        %948 = vmatprep.subr.bf16.mxu0 0
        %949 = vmatpush1.bf16.msra.mxu0 0
        %950 = vmatprep.subr.bf16.mxu0 0
        %951 = vmatpush1.bf16.msra.mxu0 0
        %952 = vmatprep.subr.bf16.mxu0 0
        %953 = vmatpush1.bf16.msra.mxu0 0
        %954 = vmatprep.subr.bf16.mxu0 0
        %955 = vmatpush1.bf16.msra.mxu0 0
        %956 = vmatprep.subr.bf16.mxu0 0
        %957 = vmatpush1.bf16.msra.mxu0 0
        %958 = vmatprep.subr.bf16.mxu0 0
        %959 = vmatpush1.bf16.msra.mxu0 0
        %960 = vmatprep.subr.bf16.mxu0 0
        %961 = vmatpush1.bf16.msra.mxu0 0
        %962 = vmatprep.subr.bf16.mxu0 0
        %963 = vmatpush1.bf16.msra.mxu0 0
        %964 = vmatprep.mubr.bf16.mxu0 0
        %965 = vmatmul.mubr.bf16.gmra.mrb[0].mxu0 %v930
        %v966 = vpop.f32.mrb[0].mxu0
        %v967 = vadd.f32 0.0, %v966
        %v968 = vpop.f32.mrb[0].mxu0
        %v969 = vpop.f32.mrb[0].mxu0
        %v970 = vadd.f32 0.0, %v969
        %v971 = vpop.f32.mrb[0].mxu0
        %972 = vdwg.mxu0
        %v973 = vld [vmem:[#allocation5] sm:$0xff]
        %v974 = vld [vmem:[#allocation5 + $0x8] sm:$0xff]
        %976 = vset.pattern.permute.xlu0 0
        %977 = vperm.xlu0 %976, %v888
        %v978 = vpop.permute.xlu0 %977
        %981 = vset.pattern.permute.xlu0 0
        %982 = vperm.xlu0 %981, %v890
        %v983 = vpop.permute.xlu0 %982
        %v985 = vmul.f32 %v978, %v973
        %v986 = vmul.f32 %v983, %v974
        %v987 = vadd.f32 %v985, %v967
        %v988 = vadd.f32 %v986, %v970
        %989 = vst.msk [vmem:[#allocation5] sm:$0xff] %vm826, %v987
        %990 = vst.msk [vmem:[#allocation5 + $0x8] sm:$0xff] %vm826, %v988
        %991 = vst.msk [vmem:[#allocation3] sm:$0xff] %vm919, %v883
        %992 = vst.msk [vmem:[#allocation3 + $0x8] sm:$0xff] %vm919, %v884
        %994 = vrot.lane.b32.xlu0 %v816, 96
        %v995 = vpop.permute.xlu0 %994
        %996 = vrot.lane.b32.xlu0 %v825, 96
        %v997 = vpop.permute.xlu0 %996
        %v999 = vsel %vm826, %v995, 0
        %v1002 = vsel %vm826, %v997, 0
        %1004 = vmatprep.subr.bf16.mxu0 0
        %1005 = vmatpush1.bf16.xpose.msra.mxu0 %v1002
        %1006 = vmatprep.subr.bf16.mxu0 0
        %1007 = vmatpush1.bf16.xpose.msra.mxu0 0
        %1008 = vmatprep.subr.bf16.mxu0 0
        %1009 = vmatpush1.bf16.xpose.msra.mxu0 0
        %1010 = vmatprep.subr.bf16.mxu0 0
        %1011 = vmatpush1.bf16.xpose.msra.mxu0 0
        %1012 = vmatprep.subr.bf16.mxu0 0
        %1013 = vmatpush1.bf16.xpose.msra.mxu0 0
        %1014 = vmatprep.subr.bf16.mxu0 0
        %1015 = vmatpush1.bf16.xpose.msra.mxu0 0
        %1016 = vmatprep.subr.bf16.mxu0 0
        %1017 = vmatpush1.bf16.xpose.msra.mxu0 0
        %1018 = vmatprep.subr.bf16.mxu0 0
        %1019 = vmatpush1.bf16.xpose.msra.mxu0 0
        %1020 = vmatprep.subr.bf16.mxu0 0
        %1021 = vmatpush1.bf16.xpose.msra.mxu0 0
        %1022 = vmatprep.subr.bf16.mxu0 0
        %1023 = vmatpush1.bf16.xpose.msra.mxu0 0
        %1024 = vmatprep.subr.bf16.mxu0 0
        %1025 = vmatpush1.bf16.xpose.msra.mxu0 0
        %1026 = vmatprep.subr.bf16.mxu0 0
        %1027 = vmatpush1.bf16.xpose.msra.mxu0 0
        %1028 = vmatprep.subr.bf16.mxu0 0
        %1029 = vmatpush1.bf16.xpose.msra.mxu0 0
        %1030 = vmatprep.subr.bf16.mxu0 0
        %1031 = vmatpush1.bf16.xpose.msra.mxu0 0
        %1032 = vmatprep.subr.bf16.mxu0 0
        %1033 = vmatpush1.bf16.xpose.msra.mxu0 0
        %1034 = vmatprep.subr.bf16.mxu0 0
        %1035 = vmatpush1.bf16.xpose.msra.mxu0 0
        %1036 = vmatprep.mubr.bf16.mxu0 0
        %1037 = vmatmul.mubr.bf16.gmra.mrb[0].mxu0 %v999
        %v1038 = vpop.f32.mrb[0].mxu0
        %v1039 = vadd.f32 0.0, %v1038
        %v1040 = vpop.f32.mrb[0].mxu0
        %v1041 = vpop.f32.mrb[0].mxu0
        %v1042 = vadd.f32 0.0, %v1041
        %v1043 = vpop.f32.mrb[0].mxu0
        %1044 = vdwg.mxu0
        %v1045 = vld [vmem:[#allocation3] sm:$0xff]
        %v1046 = vld [vmem:[#allocation3 + $0x8] sm:$0xff]
        %v1047 = vsel %vm876, %v1039, -inf
        %1048 = vmax.xlane.f32.xlu0 %v1047
        %v1049 = vpop.xlane.xlu0 %1048
        %v1050 = vsel %vm876, %v1042, -inf
        %1051 = vmax.xlane.f32.xlu0 %v1050
        %v1052 = vpop.xlane.xlu0 %1051
        %v1053 = vmax.f32 %v1045, %v1049
        %v1054 = vmax.f32 %v1046, %v1052
        %v1055 = vsub.f32 %v1045, %v1053
        %v1056 = vsub.f32 %v1046, %v1054
        %v1057 = vmul.f32 %v1055, 1.442695
        %v1058 = vpow.pop %v1057
        %v1059 = vmul.f32 %v1056, 1.442695
        %v1060 = vpow.pop %v1059
        %1062 = vset.pattern.permute.xlu0 1
        %1063 = vperm.xlu0 %1062, %v1053
        %v1064 = vpop.permute.xlu0 %1063
        %1067 = vset.pattern.permute.xlu0 1
        %1068 = vperm.xlu0 %1067, %v1054
        %v1069 = vpop.permute.xlu0 %1068
        %v1071 = vsub.f32 %v1039, %v1064
        %v1072 = vsub.f32 %v1042, %v1069
        %v1073 = vmul.f32 %v1071, 1.442695
        %v1074 = vpow.pop %v1073
        %v1075 = vmul.f32 %v1072, 1.442695
        %v1076 = vpow.pop %v1075
        %v1077 = vld [vmem:[#allocation4] sm:$0xff]
        %v1078 = vld [vmem:[#allocation4 + $0x8] sm:$0xff]
        %v1079 = vmul.f32 %v1058, %v1077
        %v1080 = vmul.f32 %v1060, %v1078
        %v1081 = vsel %vm876, %v1074, 0.0
        %1082 = vadd.xlane.f32.xlu0 %v1081
        %v1083 = vpop.xlane.xlu0 %1082
        %v1084 = vsel %vm876, %v1076, 0.0
        %1085 = vadd.xlane.f32.xlu0 %v1084
        %v1086 = vpop.xlane.xlu0 %1085
        %v1087 = vadd.f32 %v1079, %v1083
        %v1088 = vadd.f32 %v1080, %v1086
        %vm1089 = vcmask 15368
        %1090 = vst.msk [vmem:[#allocation4] sm:$0xff] %vm1089, %v1087
        %1091 = vst.msk [vmem:[#allocation4 + $0x8] sm:$0xff] %vm1089, %v1088
        %v1092 = vpack.c.bf16 %v1076, %v1074
        %1093 = vrot.lane.b32.xlu0 %v927, 96
        %v1094 = vpop.permute.xlu0 %1093
        %v1097 = vsel %vm876, %v1092, 0
        %1099 = vmatprep.subr.bf16.mxu0 0
        %1100 = vmatpush1.bf16.msra.mxu0 %v1094
        %1101 = vmatprep.subr.bf16.mxu0 0
        %1102 = vmatpush1.bf16.msra.mxu0 0
        %1103 = vmatprep.subr.bf16.mxu0 0
        %1104 = vmatpush1.bf16.msra.mxu0 0
        %1105 = vmatprep.subr.bf16.mxu0 0
        %1106 = vmatpush1.bf16.msra.mxu0 0
        %1107 = vmatprep.subr.bf16.mxu0 0
        %1108 = vmatpush1.bf16.msra.mxu0 0
        %1109 = vmatprep.subr.bf16.mxu0 0
        %1110 = vmatpush1.bf16.msra.mxu0 0
        %1111 = vmatprep.subr.bf16.mxu0 0
        %1112 = vmatpush1.bf16.msra.mxu0 0
        %1113 = vmatprep.subr.bf16.mxu0 0
        %1114 = vmatpush1.bf16.msra.mxu0 0
        %1115 = vmatprep.subr.bf16.mxu0 0
        %1116 = vmatpush1.bf16.msra.mxu0 0
        %1117 = vmatprep.subr.bf16.mxu0 0
        %1118 = vmatpush1.bf16.msra.mxu0 0
        %1119 = vmatprep.subr.bf16.mxu0 0
        %1120 = vmatpush1.bf16.msra.mxu0 0
        %1121 = vmatprep.subr.bf16.mxu0 0
        %1122 = vmatpush1.bf16.msra.mxu0 0
        %1123 = vmatprep.subr.bf16.mxu0 0
        %1124 = vmatpush1.bf16.msra.mxu0 0
        %1125 = vmatprep.subr.bf16.mxu0 0
        %1126 = vmatpush1.bf16.msra.mxu0 0
        %1127 = vmatprep.subr.bf16.mxu0 0
        %1128 = vmatpush1.bf16.msra.mxu0 0
        %1129 = vmatprep.subr.bf16.mxu0 0
        %1130 = vmatpush1.bf16.msra.mxu0 0
        %1131 = vmatprep.mubr.bf16.mxu0 0
        %1132 = vmatmul.mubr.bf16.gmra.mrb[0].mxu0 %v1097
        %v1133 = vpop.f32.mrb[0].mxu0
        %v1134 = vadd.f32 0.0, %v1133
        %v1135 = vpop.f32.mrb[0].mxu0
        %v1136 = vpop.f32.mrb[0].mxu0
        %v1137 = vadd.f32 0.0, %v1136
        %v1138 = vpop.f32.mrb[0].mxu0
        %1139 = vdwg.mxu0
        %v1140 = vld [vmem:[#allocation5] sm:$0xff]
        %v1141 = vld [vmem:[#allocation5 + $0x8] sm:$0xff]
        %1143 = vset.pattern.permute.xlu0 1
        %1144 = vperm.xlu0 %1143, %v1058
        %v1145 = vpop.permute.xlu0 %1144
        %1148 = vset.pattern.permute.xlu0 1
        %1149 = vperm.xlu0 %1148, %v1060
        %v1150 = vpop.permute.xlu0 %1149
        %v1152 = vmul.f32 %v1145, %v1140
        %v1153 = vmul.f32 %v1150, %v1141
        %1156 = vrot.lane.b32.xlu0 %v1134, 32
        %v1157 = vpop.permute.xlu0 %1156
        %1158 = vrot.lane.b32.xlu0 %v1137, 32
        %v1159 = vpop.permute.xlu0 %1158
        %v1162 = vadd.f32 %v1152, %v1157
        %v1163 = vadd.f32 %v1153, %v1159
        %vm1164 = vcmask 523520
        %1165 = vst.msk [vmem:[#allocation5] sm:$0xff] %vm1164, %v1162
        %1166 = vst.msk [vmem:[#allocation5 + $0x8] sm:$0xff] %vm1164, %v1163
        %1167 = vst.msk [vmem:[#allocation3] sm:$0xff] %vm1089, %v1053
        %1168 = vst.msk [vmem:[#allocation3 + $0x8] sm:$0xff] %vm1089, %v1054
        %1169 = vrot.lane.b32.xlu0 %v816, 64
        %v1170 = vpop.permute.xlu0 %1169
        %1171 = vrot.lane.b32.xlu0 %v825, 64
        %v1172 = vpop.permute.xlu0 %1171
        %v1174 = vsel %vm826, %v1170, 0
        %v1177 = vsel %vm826, %v1172, 0
        %1179 = vmatprep.subr.bf16.mxu0 0
        %1180 = vmatpush1.bf16.xpose.msra.mxu0 %v1177
        %1181 = vmatprep.subr.bf16.mxu0 0
        %1182 = vmatpush1.bf16.xpose.msra.mxu0 0
        %1183 = vmatprep.subr.bf16.mxu0 0
        %1184 = vmatpush1.bf16.xpose.msra.mxu0 0
        %1185 = vmatprep.subr.bf16.mxu0 0
        %1186 = vmatpush1.bf16.xpose.msra.mxu0 0
        %1187 = vmatprep.subr.bf16.mxu0 0
        %1188 = vmatpush1.bf16.xpose.msra.mxu0 0
        %1189 = vmatprep.subr.bf16.mxu0 0
        %1190 = vmatpush1.bf16.xpose.msra.mxu0 0
        %1191 = vmatprep.subr.bf16.mxu0 0
        %1192 = vmatpush1.bf16.xpose.msra.mxu0 0
        %1193 = vmatprep.subr.bf16.mxu0 0
        %1194 = vmatpush1.bf16.xpose.msra.mxu0 0
        %1195 = vmatprep.subr.bf16.mxu0 0
        %1196 = vmatpush1.bf16.xpose.msra.mxu0 0
        %1197 = vmatprep.subr.bf16.mxu0 0
        %1198 = vmatpush1.bf16.xpose.msra.mxu0 0
        %1199 = vmatprep.subr.bf16.mxu0 0
        %1200 = vmatpush1.bf16.xpose.msra.mxu0 0
        %1201 = vmatprep.subr.bf16.mxu0 0
        %1202 = vmatpush1.bf16.xpose.msra.mxu0 0
        %1203 = vmatprep.subr.bf16.mxu0 0
        %1204 = vmatpush1.bf16.xpose.msra.mxu0 0
        %1205 = vmatprep.subr.bf16.mxu0 0
        %1206 = vmatpush1.bf16.xpose.msra.mxu0 0
        %1207 = vmatprep.subr.bf16.mxu0 0
        %1208 = vmatpush1.bf16.xpose.msra.mxu0 0
        %1209 = vmatprep.subr.bf16.mxu0 0
        %1210 = vmatpush1.bf16.xpose.msra.mxu0 0
        %1211 = vmatprep.mubr.bf16.mxu0 0
        %1212 = vmatmul.mubr.bf16.gmra.mrb[0].mxu0 %v1174
        %v1213 = vpop.f32.mrb[0].mxu0
        %v1214 = vadd.f32 0.0, %v1213
        %v1215 = vpop.f32.mrb[0].mxu0
        %v1216 = vpop.f32.mrb[0].mxu0
        %v1217 = vadd.f32 0.0, %v1216
        %v1218 = vpop.f32.mrb[0].mxu0
        %1219 = vdwg.mxu0
        %v1220 = vld [vmem:[#allocation3] sm:$0xff]
        %v1221 = vld [vmem:[#allocation3 + $0x8] sm:$0xff]
        %v1222 = vsel %vm876, %v1214, -inf
        %1223 = vmax.xlane.f32.xlu0 %v1222
        %v1224 = vpop.xlane.xlu0 %1223
        %v1225 = vsel %vm876, %v1217, -inf
        %1226 = vmax.xlane.f32.xlu0 %v1225
        %v1227 = vpop.xlane.xlu0 %1226
        %v1228 = vmax.f32 %v1220, %v1224
        %v1229 = vmax.f32 %v1221, %v1227
        %v1230 = vsub.f32 %v1220, %v1228
        %v1231 = vsub.f32 %v1221, %v1229
        %v1232 = vmul.f32 %v1230, 1.442695
        %v1233 = vpow.pop %v1232
        %v1234 = vmul.f32 %v1231, 1.442695
        %v1235 = vpow.pop %v1234
        %1237 = vset.pattern.permute.xlu0 2
        %1238 = vperm.xlu0 %1237, %v1228
        %v1239 = vpop.permute.xlu0 %1238
        %1242 = vset.pattern.permute.xlu0 2
        %1243 = vperm.xlu0 %1242, %v1229
        %v1244 = vpop.permute.xlu0 %1243
        %v1246 = vsub.f32 %v1214, %v1239
        %v1247 = vsub.f32 %v1217, %v1244
        %v1248 = vmul.f32 %v1246, 1.442695
        %v1249 = vpow.pop %v1248
        %v1250 = vmul.f32 %v1247, 1.442695
        %v1251 = vpow.pop %v1250
        %v1252 = vld [vmem:[#allocation4] sm:$0xff]
        %v1253 = vld [vmem:[#allocation4 + $0x8] sm:$0xff]
        %v1254 = vmul.f32 %v1233, %v1252
        %v1255 = vmul.f32 %v1235, %v1253
        %v1256 = vsel %vm876, %v1249, 0.0
        %1257 = vadd.xlane.f32.xlu0 %v1256
        %v1258 = vpop.xlane.xlu0 %1257
        %v1259 = vsel %vm876, %v1251, 0.0
        %1260 = vadd.xlane.f32.xlu0 %v1259
        %v1261 = vpop.xlane.xlu0 %1260
        %v1262 = vadd.f32 %v1254, %v1258
        %v1263 = vadd.f32 %v1255, %v1261
        %vm1264 = vcmask 23568
        %1265 = vst.msk [vmem:[#allocation4] sm:$0xff] %vm1264, %v1262
        %1266 = vst.msk [vmem:[#allocation4 + $0x8] sm:$0xff] %vm1264, %v1263
        %v1267 = vpack.c.bf16 %v1251, %v1249
        %1268 = vrot.lane.b32.xlu0 %v927, 64
        %v1269 = vpop.permute.xlu0 %1268
        %v1272 = vsel %vm876, %v1267, 0
        %1274 = vmatprep.subr.bf16.mxu0 0
        %1275 = vmatpush1.bf16.msra.mxu0 %v1269
        %1276 = vmatprep.subr.bf16.mxu0 0
        %1277 = vmatpush1.bf16.msra.mxu0 0
        %1278 = vmatprep.subr.bf16.mxu0 0
        %1279 = vmatpush1.bf16.msra.mxu0 0
        %1280 = vmatprep.subr.bf16.mxu0 0
        %1281 = vmatpush1.bf16.msra.mxu0 0
        %1282 = vmatprep.subr.bf16.mxu0 0
        %1283 = vmatpush1.bf16.msra.mxu0 0
        %1284 = vmatprep.subr.bf16.mxu0 0
        %1285 = vmatpush1.bf16.msra.mxu0 0
        %1286 = vmatprep.subr.bf16.mxu0 0
        %1287 = vmatpush1.bf16.msra.mxu0 0
        %1288 = vmatprep.subr.bf16.mxu0 0
        %1289 = vmatpush1.bf16.msra.mxu0 0
        %1290 = vmatprep.subr.bf16.mxu0 0
        %1291 = vmatpush1.bf16.msra.mxu0 0
        %1292 = vmatprep.subr.bf16.mxu0 0
        %1293 = vmatpush1.bf16.msra.mxu0 0
        %1294 = vmatprep.subr.bf16.mxu0 0
        %1295 = vmatpush1.bf16.msra.mxu0 0
        %1296 = vmatprep.subr.bf16.mxu0 0
        %1297 = vmatpush1.bf16.msra.mxu0 0
        %1298 = vmatprep.subr.bf16.mxu0 0
        %1299 = vmatpush1.bf16.msra.mxu0 0
        %1300 = vmatprep.subr.bf16.mxu0 0
        %1301 = vmatpush1.bf16.msra.mxu0 0
        %1302 = vmatprep.subr.bf16.mxu0 0
        %1303 = vmatpush1.bf16.msra.mxu0 0
        %1304 = vmatprep.subr.bf16.mxu0 0
        %1305 = vmatpush1.bf16.msra.mxu0 0
        %1306 = vmatprep.mubr.bf16.mxu0 0
        %1307 = vmatmul.mubr.bf16.gmra.mrb[0].mxu0 %v1272
        %v1308 = vpop.f32.mrb[0].mxu0
        %v1309 = vadd.f32 0.0, %v1308
        %v1310 = vpop.f32.mrb[0].mxu0
        %v1311 = vpop.f32.mrb[0].mxu0
        %v1312 = vadd.f32 0.0, %v1311
        %v1313 = vpop.f32.mrb[0].mxu0
        %1314 = vdwg.mxu0
        %v1315 = vld [vmem:[#allocation5] sm:$0xff]
        %v1316 = vld [vmem:[#allocation5 + $0x8] sm:$0xff]
        %1318 = vset.pattern.permute.xlu0 2
        %1319 = vperm.xlu0 %1318, %v1233
        %v1320 = vpop.permute.xlu0 %1319
        %1323 = vset.pattern.permute.xlu0 2
        %1324 = vperm.xlu0 %1323, %v1235
        %v1325 = vpop.permute.xlu0 %1324
        %v1327 = vmul.f32 %v1320, %v1315
        %v1328 = vmul.f32 %v1325, %v1316
        %1331 = vrot.lane.b32.xlu0 %v1309, 64
        %v1332 = vpop.permute.xlu0 %1331
        %1333 = vrot.lane.b32.xlu0 %v1312, 64
        %v1334 = vpop.permute.xlu0 %1333
        %v1337 = vadd.f32 %v1327, %v1332
        %v1338 = vadd.f32 %v1328, %v1334
        %vm1339 = vcmask 785920
        %1340 = vst.msk [vmem:[#allocation5] sm:$0xff] %vm1339, %v1337
        %1341 = vst.msk [vmem:[#allocation5 + $0x8] sm:$0xff] %vm1339, %v1338
        %1342 = vst.msk [vmem:[#allocation3] sm:$0xff] %vm1264, %v1228
        %1343 = vst.msk [vmem:[#allocation3 + $0x8] sm:$0xff] %vm1264, %v1229
        %1344 = vrot.lane.b32.xlu0 %v816, 32
        %v1345 = vpop.permute.xlu0 %1344
        %1346 = vrot.lane.b32.xlu0 %v825, 32
        %v1347 = vpop.permute.xlu0 %1346
        %v1349 = vsel %vm826, %v1345, 0
        %v1352 = vsel %vm826, %v1347, 0
        %1354 = vmatprep.subr.bf16.mxu0 0
        %1355 = vmatpush1.bf16.xpose.msra.mxu0 %v1352
        %1356 = vmatprep.subr.bf16.mxu0 0
        %1357 = vmatpush1.bf16.xpose.msra.mxu0 0
        %1358 = vmatprep.subr.bf16.mxu0 0
        %1359 = vmatpush1.bf16.xpose.msra.mxu0 0
        %1360 = vmatprep.subr.bf16.mxu0 0
        %1361 = vmatpush1.bf16.xpose.msra.mxu0 0
        %1362 = vmatprep.subr.bf16.mxu0 0
        %1363 = vmatpush1.bf16.xpose.msra.mxu0 0
        %1364 = vmatprep.subr.bf16.mxu0 0
        %1365 = vmatpush1.bf16.xpose.msra.mxu0 0
        %1366 = vmatprep.subr.bf16.mxu0 0
        %1367 = vmatpush1.bf16.xpose.msra.mxu0 0
        %1368 = vmatprep.subr.bf16.mxu0 0
        %1369 = vmatpush1.bf16.xpose.msra.mxu0 0
        %1370 = vmatprep.subr.bf16.mxu0 0
        %1371 = vmatpush1.bf16.xpose.msra.mxu0 0
        %1372 = vmatprep.subr.bf16.mxu0 0
        %1373 = vmatpush1.bf16.xpose.msra.mxu0 0
        %1374 = vmatprep.subr.bf16.mxu0 0
        %1375 = vmatpush1.bf16.xpose.msra.mxu0 0
        %1376 = vmatprep.subr.bf16.mxu0 0
        %1377 = vmatpush1.bf16.xpose.msra.mxu0 0
        %1378 = vmatprep.subr.bf16.mxu0 0
        %1379 = vmatpush1.bf16.xpose.msra.mxu0 0
        %1380 = vmatprep.subr.bf16.mxu0 0
        %1381 = vmatpush1.bf16.xpose.msra.mxu0 0
        %1382 = vmatprep.subr.bf16.mxu0 0
        %1383 = vmatpush1.bf16.xpose.msra.mxu0 0
        %1384 = vmatprep.subr.bf16.mxu0 0
        %1385 = vmatpush1.bf16.xpose.msra.mxu0 0
        %1386 = vmatprep.mubr.bf16.mxu0 0
        %1387 = vmatmul.mubr.bf16.gmra.mrb[0].mxu0 %v1349
        %v1388 = vpop.f32.mrb[0].mxu0
        %v1389 = vadd.f32 0.0, %v1388
        %v1390 = vpop.f32.mrb[0].mxu0
        %v1391 = vpop.f32.mrb[0].mxu0
        %v1392 = vadd.f32 0.0, %v1391
        %v1393 = vpop.f32.mrb[0].mxu0
        %1394 = vdwg.mxu0
        %v1395 = vld [vmem:[#allocation3] sm:$0xff]
        %v1396 = vld [vmem:[#allocation3 + $0x8] sm:$0xff]
        %v1397 = vsel %vm876, %v1389, -inf
        %1398 = vmax.xlane.f32.xlu0 %v1397
        %v1399 = vpop.xlane.xlu0 %1398
        %v1400 = vsel %vm876, %v1392, -inf
        %1401 = vmax.xlane.f32.xlu0 %v1400
        %v1402 = vpop.xlane.xlu0 %1401
        %v1403 = vmax.f32 %v1395, %v1399
        %v1404 = vmax.f32 %v1396, %v1402
        %v1405 = vsub.f32 %v1395, %v1403
        %v1406 = vsub.f32 %v1396, %v1404
        %v1407 = vmul.f32 %v1405, 1.442695
        %v1408 = vpow.pop %v1407
        %v1409 = vmul.f32 %v1406, 1.442695
        %v1410 = vpow.pop %v1409
        %1412 = vset.pattern.permute.xlu0 3
        %1413 = vperm.xlu0 %1412, %v1403
        %v1414 = vpop.permute.xlu0 %1413
        %1417 = vset.pattern.permute.xlu0 3
        %1418 = vperm.xlu0 %1417, %v1404
        %v1419 = vpop.permute.xlu0 %1418
        %v1421 = vsub.f32 %v1389, %v1414
        %v1422 = vsub.f32 %v1392, %v1419
        %v1423 = vmul.f32 %v1421, 1.442695
        %v1424 = vpow.pop %v1423
        %v1425 = vmul.f32 %v1422, 1.442695
        %v1426 = vpow.pop %v1425
        %v1427 = vld [vmem:[#allocation4] sm:$0xff]
        %v1428 = vld [vmem:[#allocation4 + $0x8] sm:$0xff]
        %v1429 = vmul.f32 %v1408, %v1427
        %v1430 = vmul.f32 %v1410, %v1428
        %v1431 = vsel %vm876, %v1424, 0.0
        %1432 = vadd.xlane.f32.xlu0 %v1431
        %v1433 = vpop.xlane.xlu0 %1432
        %v1434 = vsel %vm876, %v1426, 0.0
        %1435 = vadd.xlane.f32.xlu0 %v1434
        %v1436 = vpop.xlane.xlu0 %1435
        %v1437 = vadd.f32 %v1429, %v1433
        %v1438 = vadd.f32 %v1430, %v1436
        %vm1439 = vcmask 31768
        %1440 = vst.msk [vmem:[#allocation4] sm:$0xff] %vm1439, %v1437
        %1441 = vst.msk [vmem:[#allocation4 + $0x8] sm:$0xff] %vm1439, %v1438
        %v1442 = vpack.c.bf16 %v1426, %v1424
        %1443 = vrot.lane.b32.xlu0 %v927, 32
        %v1444 = vpop.permute.xlu0 %1443
        %v1447 = vsel %vm876, %v1442, 0
        %1449 = vmatprep.subr.bf16.mxu0 0
        %1450 = vmatpush1.bf16.msra.mxu0 %v1444
        %1451 = vmatprep.subr.bf16.mxu0 0
        %1452 = vmatpush1.bf16.msra.mxu0 0
        %1453 = vmatprep.subr.bf16.mxu0 0
        %1454 = vmatpush1.bf16.msra.mxu0 0
        %1455 = vmatprep.subr.bf16.mxu0 0
        %1456 = vmatpush1.bf16.msra.mxu0 0
        %1457 = vmatprep.subr.bf16.mxu0 0
        %1458 = vmatpush1.bf16.msra.mxu0 0
        %1459 = vmatprep.subr.bf16.mxu0 0
        %1460 = vmatpush1.bf16.msra.mxu0 0
        %1461 = vmatprep.subr.bf16.mxu0 0
        %1462 = vmatpush1.bf16.msra.mxu0 0
        %1463 = vmatprep.subr.bf16.mxu0 0
        %1464 = vmatpush1.bf16.msra.mxu0 0
        %1465 = vmatprep.subr.bf16.mxu0 0
        %1466 = vmatpush1.bf16.msra.mxu0 0
        %1467 = vmatprep.subr.bf16.mxu0 0
        %1468 = vmatpush1.bf16.msra.mxu0 0
        %1469 = vmatprep.subr.bf16.mxu0 0
        %1470 = vmatpush1.bf16.msra.mxu0 0
        %1471 = vmatprep.subr.bf16.mxu0 0
        %1472 = vmatpush1.bf16.msra.mxu0 0
        %1473 = vmatprep.subr.bf16.mxu0 0
        %1474 = vmatpush1.bf16.msra.mxu0 0
        %1475 = vmatprep.subr.bf16.mxu0 0
        %1476 = vmatpush1.bf16.msra.mxu0 0
        %1477 = vmatprep.subr.bf16.mxu0 0
        %1478 = vmatpush1.bf16.msra.mxu0 0
        %1479 = vmatprep.subr.bf16.mxu0 0
        %1480 = vmatpush1.bf16.msra.mxu0 0
        %1481 = vmatprep.mubr.bf16.mxu0 0
        %1482 = vmatmul.mubr.bf16.gmra.mrb[0].mxu0 %v1447
        %v1483 = vpop.f32.mrb[0].mxu0
        %v1484 = vadd.f32 0.0, %v1483
        %v1485 = vpop.f32.mrb[0].mxu0
        %v1486 = vpop.f32.mrb[0].mxu0
        %v1487 = vadd.f32 0.0, %v1486
        %v1488 = vpop.f32.mrb[0].mxu0
        %1489 = vdwg.mxu0
        %v1490 = vld [vmem:[#allocation5] sm:$0xff]
        %v1491 = vld [vmem:[#allocation5 + $0x8] sm:$0xff]
        %1493 = vset.pattern.permute.xlu0 3
        %1494 = vperm.xlu0 %1493, %v1408
        %v1495 = vpop.permute.xlu0 %1494
        %1498 = vset.pattern.permute.xlu0 3
        %1499 = vperm.xlu0 %1498, %v1410
        %v1500 = vpop.permute.xlu0 %1499
        %v1502 = vmul.f32 %v1495, %v1490
        %v1503 = vmul.f32 %v1500, %v1491
        %1506 = vrot.lane.b32.xlu0 %v1484, 96
        %v1507 = vpop.permute.xlu0 %1506
        %1508 = vrot.lane.b32.xlu0 %v1487, 96
        %v1509 = vpop.permute.xlu0 %1508
        %v1512 = vadd.f32 %v1502, %v1507
        %v1513 = vadd.f32 %v1503, %v1509
        %vm1514 = vcmask 1048320
        %1515 = vst.msk [vmem:[#allocation5] sm:$0xff] %vm1514, %v1512
        %1516 = vst.msk [vmem:[#allocation5 + $0x8] sm:$0xff] %vm1514, %v1513
        %1517 = vst.msk [vmem:[#allocation3] sm:$0xff] %vm1439, %v1403
        %1518 = vst.msk [vmem:[#allocation3 + $0x8] sm:$0xff] %vm1439, %v1404
        %p1519 = scmp.eq.s32.totalorder %s44, 1
        // Predicated region
        $region113: #{tpu_custom_call.1} parent=79 // pred_check
          %p1520 = pneg %p1519
        $region114: #{tpu_custom_call.1} parent=79 // pred_check_branch
          %1522 = sbr.rel (%p1520) target = $region116
        $region115: #{tpu_custom_call.1} parent=79 // pred_region
          %v1523 = vld [vmem:[#allocation5] sm:$0xff]
          %v1524 = vld [vmem:[#allocation5 + $0x8] sm:$0xff]
          %v1525 = vld [vmem:[#allocation4] sm:$0xff]
          %v1526 = vld [vmem:[#allocation4 + $0x8] sm:$0xff]
          %v1527 = vrcp.pop %v1525
          %v1528 = vrcp.pop %v1526
          %1530 = vset.pattern.permute.xlu0 0
          %1531 = vperm.xlu0 %1530, %v1527
          %v1532 = vpop.permute.xlu0 %1531
          %1535 = vset.pattern.permute.xlu0 0
          %1536 = vperm.xlu0 %1535, %v1528
          %v1537 = vpop.permute.xlu0 %1536
          %v1539 = vmul.f32 %v1523, %v1532
          %v1540 = vmul.f32 %v1524, %v1537
          %1541 = vst.msk [vmem:[#allocation5] sm:$0xff] %vm826, %v1539
          %1542 = vst.msk [vmem:[#allocation5 + $0x8] sm:$0xff] %vm826, %v1540
          %v1543 = vld [vmem:[#allocation5] sm:$0xff]
          %v1544 = vld [vmem:[#allocation5 + $0x8] sm:$0xff]
          %v1545 = vld [vmem:[#allocation4] sm:$0xff]
          %v1546 = vld [vmem:[#allocation4 + $0x8] sm:$0xff]
          %v1547 = vrcp.pop %v1545
          %v1548 = vrcp.pop %v1546
          %1550 = vset.pattern.permute.xlu0 1
          %1551 = vperm.xlu0 %1550, %v1547
          %v1552 = vpop.permute.xlu0 %1551
          %1555 = vset.pattern.permute.xlu0 1
          %1556 = vperm.xlu0 %1555, %v1548
          %v1557 = vpop.permute.xlu0 %1556
          %v1559 = vmul.f32 %v1543, %v1552
          %v1560 = vmul.f32 %v1544, %v1557
          %1561 = vst.msk [vmem:[#allocation5] sm:$0xff] %vm1164, %v1559
          %1562 = vst.msk [vmem:[#allocation5 + $0x8] sm:$0xff] %vm1164, %v1560
          %v1563 = vld [vmem:[#allocation5] sm:$0xff]
          %v1564 = vld [vmem:[#allocation5 + $0x8] sm:$0xff]
          %v1565 = vld [vmem:[#allocation4] sm:$0xff]
          %v1566 = vld [vmem:[#allocation4 + $0x8] sm:$0xff]
          %v1567 = vrcp.pop %v1565
          %v1568 = vrcp.pop %v1566
          %1570 = vset.pattern.permute.xlu0 2
          %1571 = vperm.xlu0 %1570, %v1567
          %v1572 = vpop.permute.xlu0 %1571
          %1575 = vset.pattern.permute.xlu0 2
          %1576 = vperm.xlu0 %1575, %v1568
          %v1577 = vpop.permute.xlu0 %1576
          %v1579 = vmul.f32 %v1563, %v1572
          %v1580 = vmul.f32 %v1564, %v1577
          %1581 = vst.msk [vmem:[#allocation5] sm:$0xff] %vm1339, %v1579
          %1582 = vst.msk [vmem:[#allocation5 + $0x8] sm:$0xff] %vm1339, %v1580
          %v1583 = vld [vmem:[#allocation5] sm:$0xff]
          %v1584 = vld [vmem:[#allocation5 + $0x8] sm:$0xff]
          %v1585 = vld [vmem:[#allocation4] sm:$0xff]
          %v1586 = vld [vmem:[#allocation4 + $0x8] sm:$0xff]
          %v1587 = vrcp.pop %v1585
          %v1588 = vrcp.pop %v1586
          %1590 = vset.pattern.permute.xlu0 3
          %1591 = vperm.xlu0 %1590, %v1587
          %v1592 = vpop.permute.xlu0 %1591
          %1595 = vset.pattern.permute.xlu0 3
          %1596 = vperm.xlu0 %1595, %v1588
          %v1597 = vpop.permute.xlu0 %1596
          %v1599 = vmul.f32 %v1583, %v1592
          %v1600 = vmul.f32 %v1584, %v1597
          %1601 = vst.msk [vmem:[#allocation5] sm:$0xff] %vm1514, %v1599
          %1602 = vst.msk [vmem:[#allocation5 + $0x8] sm:$0xff] %vm1514, %v1600
          %v1603 = vld [vmem:[#allocation5] sm:$0xff]
          %v1604 = vld [vmem:[#allocation5 + $0x8] sm:$0xff]
          %v1605 = vpack.c.bf16 %v1604, %v1603
          %v1606 = vld [vmem:[#allocation14] sm:$0xf]
          %v1607 = vld [vmem:[#allocation14 + $0x4] sm:$0xf]
          %v1608 = vld [vmem:[#allocation14 + $0x8] sm:$0xf]
          %v1609 = vld [vmem:[#allocation14 + $0xc] sm:$0xf]
          %v1610 = vld [vmem:[#allocation14 + $0x10] sm:$0xf]
          %v1611 = vld [vmem:[#allocation14 + $0x14] sm:$0xf]
          %v1612 = vld [vmem:[#allocation14 + $0x18] sm:$0xf]
          %v1613 = vld [vmem:[#allocation14 + $0x1c] sm:$0xf]
          %v1614 = vld [vmem:[#allocation14 + $0x20] sm:$0xf]
          %v1615 = vld [vmem:[#allocation14 + $0x24] sm:$0xf]
          %v1616 = vld [vmem:[#allocation14 + $0x28] sm:$0xf]
          %v1617 = vld [vmem:[#allocation14 + $0x2c] sm:$0xf]
          %v1618 = vld [vmem:[#allocation14 + $0x30] sm:$0xf]
          %v1619 = vld [vmem:[#allocation14 + $0x34] sm:$0xf]
          %v1620 = vld [vmem:[#allocation14 + $0x38] sm:$0xf]
          %v1621 = vld [vmem:[#allocation14 + $0x3c] sm:$0xf]
          %v1622 = vld [vmem:[%s6] sm:$0x1]
          %v1624 = vlaneseq
          %v1625 = vshrl.u32 %v1624, 7
          %v1626 = vsub.s32 0, %v1625
          %v1627 = vrot.slane %v1622, %v1626
          %v1645 = vunpack.c.l.b16 %v1606
          %v1646 = vunpack.c.l.b16 %v1607
          %v1647 = vunpack.c.l.b16 %v1608
          %v1648 = vunpack.c.l.b16 %v1609
          %v1649 = vunpack.c.l.b16 %v1610
          %v1650 = vunpack.c.l.b16 %v1611
          %v1651 = vunpack.c.l.b16 %v1612
          %v1652 = vunpack.c.l.b16 %v1613
          %v1653 = vunpack.c.l.b16 %v1614
          %v1654 = vunpack.c.l.b16 %v1615
          %v1655 = vunpack.c.l.b16 %v1616
          %v1656 = vunpack.c.l.b16 %v1617
          %v1657 = vunpack.c.l.b16 %v1618
          %v1658 = vunpack.c.l.b16 %v1619
          %v1659 = vunpack.c.l.b16 %v1620
          %v1660 = vunpack.c.l.b16 %v1621
          %v1661 = vpack.c.b16 %v1646, %v1645
          %v1662 = vpack.c.b16 %v1648, %v1647
          %v1663 = vpack.c.b16 %v1650, %v1649
          %v1664 = vpack.c.b16 %v1652, %v1651
          %v1665 = vpack.c.b16 %v1654, %v1653
          %v1666 = vpack.c.b16 %v1656, %v1655
          %v1667 = vpack.c.b16 %v1658, %v1657
          %v1668 = vpack.c.b16 %v1660, %v1659
          %1677 = vmatprep.subr.bf16.mxu0 0
          %1678 = vmatpush1.bf16.msra.mxu0 %v1661
          %1679 = vmatprep.subr.bf16.mxu0 0
          %1680 = vmatpush1.bf16.msra.mxu0 %v1662
          %1681 = vmatprep.subr.bf16.mxu0 0
          %1682 = vmatpush1.bf16.msra.mxu0 %v1663
          %1683 = vmatprep.subr.bf16.mxu0 0
          %1684 = vmatpush1.bf16.msra.mxu0 %v1664
          %1685 = vmatprep.subr.bf16.mxu0 0
          %1686 = vmatpush1.bf16.msra.mxu0 %v1665
          %1687 = vmatprep.subr.bf16.mxu0 0
          %1688 = vmatpush1.bf16.msra.mxu0 %v1666
          %1689 = vmatprep.subr.bf16.mxu0 0
          %1690 = vmatpush1.bf16.msra.mxu0 %v1667
          %1691 = vmatprep.subr.bf16.mxu0 0
          %1692 = vmatpush1.bf16.msra.mxu0 %v1668
          %1693 = vmatprep.subr.bf16.mxu0 0
          %1694 = vmatpush1.bf16.msra.mxu0 0
          %1695 = vmatprep.subr.bf16.mxu0 0
          %1696 = vmatpush1.bf16.msra.mxu0 0
          %1697 = vmatprep.subr.bf16.mxu0 0
          %1698 = vmatpush1.bf16.msra.mxu0 0
          %1699 = vmatprep.subr.bf16.mxu0 0
          %1700 = vmatpush1.bf16.msra.mxu0 0
          %1701 = vmatprep.subr.bf16.mxu0 0
          %1702 = vmatpush1.bf16.msra.mxu0 0
          %1703 = vmatprep.subr.bf16.mxu0 0
          %1704 = vmatpush1.bf16.msra.mxu0 0
          %1705 = vmatprep.subr.bf16.mxu0 0
          %1706 = vmatpush1.bf16.msra.mxu0 0
          %1707 = vmatprep.subr.bf16.mxu0 0
          %1708 = vmatpush1.bf16.msra.mxu0 0
          %1709 = vmatprep.mubr.bf16.mxu0 0
          %1710 = vmatmul.mubr.bf16.gmra.mrb[0].mxu0 %v1605
          %v1711 = vpop.f32.mrb[0].mxu0
          %v1712 = vadd.f32 %v1627, %v1711
          %v1713 = vpop.f32.mrb[0].mxu0
          %v1714 = vpop.f32.mrb[0].mxu0
          %v1715 = vadd.f32 %v1627, %v1714
          %v1716 = vpop.f32.mrb[0].mxu0
          %1717 = vdwg.mxu0
          %v1718 = vld [vmem:[%s590] sm:$0xff]
          %v1719 = vld [vmem:[%s590 + $0x8] sm:$0xff]
          %v1720 = vadd.f32 %v1718, %v1712
          %v1721 = vadd.f32 %v1719, %v1715
          %1722 = vadd.xlane.f32.xlu0 %v1720
          %v1723 = vpop.xlane.xlu0 %1722
          %1724 = vadd.xlane.f32.xlu0 %v1721
          %v1725 = vpop.xlane.xlu0 %1724
          %v1726 = vrcp.pop 128.0
          %v1727 = vmul.f32 %v1723, %v1726
          %v1728 = vmul.f32 %v1725, %v1726
          %v1729 = vsub.f32 %v1720, %v1727
          %v1730 = vsub.f32 %v1721, %v1728
          %v1731 = vmul.f32 %v1729, %v1729
          %v1732 = vmul.f32 %v1730, %v1730
          %1733 = vadd.xlane.f32.xlu0 %v1731
          %v1734 = vpop.xlane.xlu0 %1733
          %1735 = vadd.xlane.f32.xlu0 %v1732
          %v1736 = vpop.xlane.xlu0 %1735
          %v1737 = vmul.f32 %v1734, %v1726
          %v1738 = vmul.f32 %v1736, %v1726
          %v1739 = vadd.f32 %v1737, 1e-05
          %v1740 = vadd.f32 %v1738, 1e-05
          %v1741 = vrsqrt.pop %v1739
          %v1742 = vrsqrt.pop %v1740
          %v1743 = vmul.f32 %v1729, %v1741
          %v1744 = vmul.f32 %v1730, %v1742
          %v1745 = vld [vmem:[%s7] sm:$0x1]
          %v1747 = vlaneseq
          %v1748 = vshrl.u32 %v1747, 7
          %v1749 = vsub.s32 0, %v1748
          %v1750 = vrot.slane %v1745, %v1749
          %v1752 = vmul.f32 %v1743, %v1750
          %v1753 = vmul.f32 %v1744, %v1750
          %v1754 = vld [vmem:[%s8] sm:$0x1]
          %v1756 = vlaneseq
          %v1757 = vshrl.u32 %v1756, 7
          %v1758 = vsub.s32 0, %v1757
          %v1759 = vrot.slane %v1754, %v1758
          %v1761 = vadd.f32 %v1752, %v1759
          %v1762 = vadd.f32 %v1753, %v1759
          %v1763 = vpack.c.bf16 %v1762, %v1761
          %v1764 = vld [vmem:[#allocation15] sm:$0xff]
          %v1765 = vld [vmem:[#allocation15 + $0x8] sm:$0xff]
          %v1766 = vld [vmem:[#allocation15 + $0x10] sm:$0xff]
          %v1767 = vld [vmem:[#allocation15 + $0x18] sm:$0xff]
          %v1768 = vld [vmem:[#allocation15 + $0x20] sm:$0xff]
          %v1769 = vld [vmem:[#allocation15 + $0x28] sm:$0xff]
          %v1770 = vld [vmem:[#allocation15 + $0x30] sm:$0xff]
          %v1771 = vld [vmem:[#allocation15 + $0x38] sm:$0xff]
          %v1772 = vld [vmem:[#allocation15 + $0x40] sm:$0xff]
          %v1773 = vld [vmem:[#allocation15 + $0x48] sm:$0xff]
          %v1774 = vld [vmem:[#allocation15 + $0x50] sm:$0xff]
          %v1775 = vld [vmem:[#allocation15 + $0x58] sm:$0xff]
          %v1776 = vld [vmem:[#allocation15 + $0x60] sm:$0xff]
          %v1777 = vld [vmem:[#allocation15 + $0x68] sm:$0xff]
          %v1778 = vld [vmem:[#allocation15 + $0x70] sm:$0xff]
          %v1779 = vld [vmem:[#allocation15 + $0x78] sm:$0xff]
          %v1780 = vld [vmem:[%s10] sm:$0x3]
          %v1782 = vlaneseq
          %v1783 = vshrl.u32 %v1782, 7
          %v1784 = vsub.s32 0, %v1783
          %v1785 = vrot.slane %v1780, %v1784
          %v1786 = vlaneseq
          %v1787 = vshrl.u32 %v1786, 7
          %v1788 = vsub.s32 1, %v1787
          %v1789 = vrot.slane %v1780, %v1788
          %v1808 = vunpack.c.l.b16 %v1764
          %v1809 = vunpack.c.h.b16 %v1764
          %v1810 = vunpack.c.l.b16 %v1765
          %v1811 = vunpack.c.h.b16 %v1765
          %v1812 = vunpack.c.l.b16 %v1766
          %v1813 = vunpack.c.h.b16 %v1766
          %v1814 = vunpack.c.l.b16 %v1767
          %v1815 = vunpack.c.h.b16 %v1767
          %v1816 = vunpack.c.l.b16 %v1768
          %v1817 = vunpack.c.h.b16 %v1768
          %v1818 = vunpack.c.l.b16 %v1769
          %v1819 = vunpack.c.h.b16 %v1769
          %v1820 = vunpack.c.l.b16 %v1770
          %v1821 = vunpack.c.h.b16 %v1770
          %v1822 = vunpack.c.l.b16 %v1771
          %v1823 = vunpack.c.h.b16 %v1771
          %v1824 = vunpack.c.l.b16 %v1772
          %v1825 = vunpack.c.h.b16 %v1772
          %v1826 = vunpack.c.l.b16 %v1773
          %v1827 = vunpack.c.h.b16 %v1773
          %v1828 = vunpack.c.l.b16 %v1774
          %v1829 = vunpack.c.h.b16 %v1774
          %v1830 = vunpack.c.l.b16 %v1775
          %v1831 = vunpack.c.h.b16 %v1775
          %v1832 = vunpack.c.l.b16 %v1776
          %v1833 = vunpack.c.h.b16 %v1776
          %v1834 = vunpack.c.l.b16 %v1777
          %v1835 = vunpack.c.h.b16 %v1777
          %v1836 = vunpack.c.l.b16 %v1778
          %v1837 = vunpack.c.h.b16 %v1778
          %v1838 = vunpack.c.l.b16 %v1779
          %v1839 = vunpack.c.h.b16 %v1779
          %v1840 = vpack.c.b16 %v1810, %v1808
          %v1841 = vpack.c.b16 %v1811, %v1809
          %v1842 = vpack.c.b16 %v1814, %v1812
          %v1843 = vpack.c.b16 %v1815, %v1813
          %v1844 = vpack.c.b16 %v1818, %v1816
          %v1845 = vpack.c.b16 %v1819, %v1817
          %v1846 = vpack.c.b16 %v1822, %v1820
          %v1847 = vpack.c.b16 %v1823, %v1821
          %v1848 = vpack.c.b16 %v1826, %v1824
          %v1849 = vpack.c.b16 %v1827, %v1825
          %v1850 = vpack.c.b16 %v1830, %v1828
          %v1851 = vpack.c.b16 %v1831, %v1829
          %v1852 = vpack.c.b16 %v1834, %v1832
          %v1853 = vpack.c.b16 %v1835, %v1833
          %v1854 = vpack.c.b16 %v1838, %v1836
          %v1855 = vpack.c.b16 %v1839, %v1837
          %1872 = vmatprep.subr.bf16.mxu0 %v1841
          %1873 = vmatpush1.bf16.msra.mxu0 %v1840
          %1874 = vmatprep.subr.bf16.mxu0 %v1843
          %1875 = vmatpush1.bf16.msra.mxu0 %v1842
          %1876 = vmatprep.subr.bf16.mxu0 %v1845
          %1877 = vmatpush1.bf16.msra.mxu0 %v1844
          %1878 = vmatprep.subr.bf16.mxu0 %v1847
          %1879 = vmatpush1.bf16.msra.mxu0 %v1846
          %1880 = vmatprep.subr.bf16.mxu0 %v1849
          %1881 = vmatpush1.bf16.msra.mxu0 %v1848
          %1882 = vmatprep.subr.bf16.mxu0 %v1851
          %1883 = vmatpush1.bf16.msra.mxu0 %v1850
          %1884 = vmatprep.subr.bf16.mxu0 %v1853
          %1885 = vmatpush1.bf16.msra.mxu0 %v1852
          %1886 = vmatprep.subr.bf16.mxu0 %v1855
          %1887 = vmatpush1.bf16.msra.mxu0 %v1854
          %1888 = vmatprep.subr.bf16.mxu0 0
          %1889 = vmatpush1.bf16.msra.mxu0 0
          %1890 = vmatprep.subr.bf16.mxu0 0
          %1891 = vmatpush1.bf16.msra.mxu0 0
          %1892 = vmatprep.subr.bf16.mxu0 0
          %1893 = vmatpush1.bf16.msra.mxu0 0
          %1894 = vmatprep.subr.bf16.mxu0 0
          %1895 = vmatpush1.bf16.msra.mxu0 0
          %1896 = vmatprep.subr.bf16.mxu0 0
          %1897 = vmatpush1.bf16.msra.mxu0 0
          %1898 = vmatprep.subr.bf16.mxu0 0
          %1899 = vmatpush1.bf16.msra.mxu0 0
          %1900 = vmatprep.subr.bf16.mxu0 0
          %1901 = vmatpush1.bf16.msra.mxu0 0
          %1902 = vmatprep.subr.bf16.mxu0 0
          %1903 = vmatpush1.bf16.msra.mxu0 0
          %1904 = vmatprep.mubr.bf16.mxu0 0
          %1905 = vmatmul.mubr.bf16.gmra.mrb[0].mxu0 %v1763
          %v1906 = vpop.f32.mrb[0].mxu0
          %v1907 = vadd.f32 %v1785, %v1906
          %v1908 = vpop.f32.mrb[0].mxu0
          %v1909 = vadd.f32 %v1789, %v1908
          %v1910 = vpop.f32.mrb[0].mxu0
          %v1911 = vadd.f32 %v1785, %v1910
          %v1912 = vpop.f32.mrb[0].mxu0
          %v1913 = vadd.f32 %v1789, %v1912
          %1914 = vdwg.mxu0
          %v1915 = vmax.f32 %v1907, 0.0
          %v1916 = vmax.f32 %v1909, 0.0
          %v1917 = vmax.f32 %v1911, 0.0
          %v1918 = vmax.f32 %v1913, 0.0
          %v1919 = vpack.c.bf16 %v1917, %v1915
          %v1920 = vpack.c.bf16 %v1918, %v1916
          %v1921 = vld [vmem:[#allocation17] sm:$0xf]
          %v1922 = vld [vmem:[#allocation17 + $0x4] sm:$0xf]
          %v1923 = vld [vmem:[#allocation17 + $0x8] sm:$0xf]
          %v1924 = vld [vmem:[#allocation17 + $0xc] sm:$0xf]
          %v1925 = vld [vmem:[#allocation17 + $0x10] sm:$0xf]
          %v1926 = vld [vmem:[#allocation17 + $0x14] sm:$0xf]
          %v1927 = vld [vmem:[#allocation17 + $0x18] sm:$0xf]
          %v1928 = vld [vmem:[#allocation17 + $0x1c] sm:$0xf]
          %v1929 = vld [vmem:[#allocation17 + $0x20] sm:$0xf]
          %v1930 = vld [vmem:[#allocation17 + $0x24] sm:$0xf]
          %v1931 = vld [vmem:[#allocation17 + $0x28] sm:$0xf]
          %v1932 = vld [vmem:[#allocation17 + $0x2c] sm:$0xf]
          %v1933 = vld [vmem:[#allocation17 + $0x30] sm:$0xf]
          %v1934 = vld [vmem:[#allocation17 + $0x34] sm:$0xf]
          %v1935 = vld [vmem:[#allocation17 + $0x38] sm:$0xf]
          %v1936 = vld [vmem:[#allocation17 + $0x3c] sm:$0xf]
          %v1937 = vld [vmem:[#allocation17 + $0x40] sm:$0xf]
          %v1938 = vld [vmem:[#allocation17 + $0x44] sm:$0xf]
          %v1939 = vld [vmem:[#allocation17 + $0x48] sm:$0xf]
          %v1940 = vld [vmem:[#allocation17 + $0x4c] sm:$0xf]
          %v1941 = vld [vmem:[#allocation17 + $0x50] sm:$0xf]
          %v1942 = vld [vmem:[#allocation17 + $0x54] sm:$0xf]
          %v1943 = vld [vmem:[#allocation17 + $0x58] sm:$0xf]
          %v1944 = vld [vmem:[#allocation17 + $0x5c] sm:$0xf]
          %v1945 = vld [vmem:[#allocation17 + $0x60] sm:$0xf]
          %v1946 = vld [vmem:[#allocation17 + $0x64] sm:$0xf]
          %v1947 = vld [vmem:[#allocation17 + $0x68] sm:$0xf]
          %v1948 = vld [vmem:[#allocation17 + $0x6c] sm:$0xf]
          %v1949 = vld [vmem:[#allocation17 + $0x70] sm:$0xf]
          %v1950 = vld [vmem:[#allocation17 + $0x74] sm:$0xf]
          %v1951 = vld [vmem:[#allocation17 + $0x78] sm:$0xf]
          %v1952 = vld [vmem:[#allocation17 + $0x7c] sm:$0xf]
          %v1985 = vunpack.c.l.b16 %v1921
          %v1986 = vunpack.c.l.b16 %v1922
          %v1987 = vunpack.c.l.b16 %v1923
          %v1988 = vunpack.c.l.b16 %v1924
          %v1989 = vunpack.c.l.b16 %v1925
          %v1990 = vunpack.c.l.b16 %v1926
          %v1991 = vunpack.c.l.b16 %v1927
          %v1992 = vunpack.c.l.b16 %v1928
          %v1993 = vunpack.c.l.b16 %v1929
          %v1994 = vunpack.c.l.b16 %v1930
          %v1995 = vunpack.c.l.b16 %v1931
          %v1996 = vunpack.c.l.b16 %v1932
          %v1997 = vunpack.c.l.b16 %v1933
          %v1998 = vunpack.c.l.b16 %v1934
          %v1999 = vunpack.c.l.b16 %v1935
          %v2000 = vunpack.c.l.b16 %v1936
          %v2001 = vunpack.c.l.b16 %v1937
          %v2002 = vunpack.c.l.b16 %v1938
          %v2003 = vunpack.c.l.b16 %v1939
          %v2004 = vunpack.c.l.b16 %v1940
          %v2005 = vunpack.c.l.b16 %v1941
          %v2006 = vunpack.c.l.b16 %v1942
          %v2007 = vunpack.c.l.b16 %v1943
          %v2008 = vunpack.c.l.b16 %v1944
          %v2009 = vunpack.c.l.b16 %v1945
          %v2010 = vunpack.c.l.b16 %v1946
          %v2011 = vunpack.c.l.b16 %v1947
          %v2012 = vunpack.c.l.b16 %v1948
          %v2013 = vunpack.c.l.b16 %v1949
          %v2014 = vunpack.c.l.b16 %v1950
          %v2015 = vunpack.c.l.b16 %v1951
          %v2016 = vunpack.c.l.b16 %v1952
          %v2017 = vpack.c.b16 %v1986, %v1985
          %v2018 = vpack.c.b16 %v1988, %v1987
          %v2019 = vpack.c.b16 %v1990, %v1989
          %v2020 = vpack.c.b16 %v1992, %v1991
          %v2021 = vpack.c.b16 %v1994, %v1993
          %v2022 = vpack.c.b16 %v1996, %v1995
          %v2023 = vpack.c.b16 %v1998, %v1997
          %v2024 = vpack.c.b16 %v2000, %v1999
          %v2025 = vpack.c.b16 %v2002, %v2001
          %v2026 = vpack.c.b16 %v2004, %v2003
          %v2027 = vpack.c.b16 %v2006, %v2005
          %v2028 = vpack.c.b16 %v2008, %v2007
          %v2029 = vpack.c.b16 %v2010, %v2009
          %v2030 = vpack.c.b16 %v2012, %v2011
          %v2031 = vpack.c.b16 %v2014, %v2013
          %v2032 = vpack.c.b16 %v2016, %v2015
          %2049 = vmatprep.subr.bf16.mxu0 0
          %2050 = vmatpush1.bf16.msra.mxu0 %v2017
          %2051 = vmatprep.subr.bf16.mxu0 0
          %2052 = vmatpush1.bf16.msra.mxu0 %v2018
          %2053 = vmatprep.subr.bf16.mxu0 0
          %2054 = vmatpush1.bf16.msra.mxu0 %v2019
          %2055 = vmatprep.subr.bf16.mxu0 0
          %2056 = vmatpush1.bf16.msra.mxu0 %v2020
          %2057 = vmatprep.subr.bf16.mxu0 0
          %2058 = vmatpush1.bf16.msra.mxu0 %v2021
          %2059 = vmatprep.subr.bf16.mxu0 0
          %2060 = vmatpush1.bf16.msra.mxu0 %v2022
          %2061 = vmatprep.subr.bf16.mxu0 0
          %2062 = vmatpush1.bf16.msra.mxu0 %v2023
          %2063 = vmatprep.subr.bf16.mxu0 0
          %2064 = vmatpush1.bf16.msra.mxu0 %v2024
          %2065 = vmatprep.subr.bf16.mxu0 0
          %2066 = vmatpush1.bf16.msra.mxu0 %v2025
          %2067 = vmatprep.subr.bf16.mxu0 0
          %2068 = vmatpush1.bf16.msra.mxu0 %v2026
          %2069 = vmatprep.subr.bf16.mxu0 0
          %2070 = vmatpush1.bf16.msra.mxu0 %v2027
          %2071 = vmatprep.subr.bf16.mxu0 0
          %2072 = vmatpush1.bf16.msra.mxu0 %v2028
          %2073 = vmatprep.subr.bf16.mxu0 0
          %2074 = vmatpush1.bf16.msra.mxu0 %v2029
          %2075 = vmatprep.subr.bf16.mxu0 0
          %2076 = vmatpush1.bf16.msra.mxu0 %v2030
          %2077 = vmatprep.subr.bf16.mxu0 0
          %2078 = vmatpush1.bf16.msra.mxu0 %v2031
          %2079 = vmatprep.subr.bf16.mxu0 0
          %2080 = vmatpush1.bf16.msra.mxu0 %v2032
          %2081 = vmatprep.mubr.bf16.mxu0 %v1920
          %2082 = vmatmul.mubr.bf16.gmra.mrb[0].mxu0 %v1919
          %v2083 = vpop.f32.mrb[0].mxu0
          %v2084 = vadd.f32 0.0, %v2083
          %v2085 = vpop.f32.mrb[0].mxu0
          %v2086 = vpop.f32.mrb[0].mxu0
          %v2087 = vadd.f32 0.0, %v2086
          %v2088 = vpop.f32.mrb[0].mxu0
          %2089 = vdwg.mxu0
          %v2090 = vadd.f32 %v1761, %v2084
          %v2091 = vadd.f32 %v1762, %v2087
          %v2092 = vld [vmem:[%s12] sm:$0x1]
          %v2094 = vlaneseq
          %v2095 = vshrl.u32 %v2094, 7
          %v2096 = vsub.s32 0, %v2095
          %v2097 = vrot.slane %v2092, %v2096
          %v2099 = vadd.f32 %v2090, %v2097
          %v2100 = vadd.f32 %v2091, %v2097
          %2101 = vadd.xlane.f32.xlu0 %v2099
          %v2102 = vpop.xlane.xlu0 %2101
          %2103 = vadd.xlane.f32.xlu0 %v2100
          %v2104 = vpop.xlane.xlu0 %2103
          %v2105 = vmul.f32 %v2102, %v1726
          %v2106 = vmul.f32 %v2104, %v1726
          %v2107 = vsub.f32 %v2099, %v2105
          %v2108 = vsub.f32 %v2100, %v2106
          %v2109 = vmul.f32 %v2107, %v2107
          %v2110 = vmul.f32 %v2108, %v2108
          %2111 = vadd.xlane.f32.xlu0 %v2109
          %v2112 = vpop.xlane.xlu0 %2111
          %2113 = vadd.xlane.f32.xlu0 %v2110
          %v2114 = vpop.xlane.xlu0 %2113
          %v2115 = vmul.f32 %v2112, %v1726
          %v2116 = vmul.f32 %v2114, %v1726
          %v2117 = vadd.f32 %v2115, 1e-05
          %v2118 = vadd.f32 %v2116, 1e-05
          %v2119 = vrsqrt.pop %v2117
          %v2120 = vrsqrt.pop %v2118
          %v2121 = vmul.f32 %v2107, %v2119
          %v2122 = vmul.f32 %v2108, %v2120
          %v2123 = vld [vmem:[%s13] sm:$0x1]
          %v2125 = vlaneseq
          %v2126 = vshrl.u32 %v2125, 7
          %v2127 = vsub.s32 0, %v2126
          %v2128 = vrot.slane %v2123, %v2127
          %v2130 = vmul.f32 %v2121, %v2128
          %v2131 = vmul.f32 %v2122, %v2128
          %v2132 = vld [vmem:[%s14] sm:$0x1]
          %v2134 = vlaneseq
          %v2135 = vshrl.u32 %v2134, 7
          %v2136 = vsub.s32 0, %v2135
          %v2137 = vrot.slane %v2132, %v2136
          %v2139 = vadd.f32 %v2130, %v2137
          %v2140 = vadd.f32 %v2131, %v2137
          %2141 = vst [vmem:[%s680] sm:$0xff] %v2139
          %2142 = vst [vmem:[%s680 + $0x8] sm:$0xff] %v2140
        $region116: #{tpu_custom_call.1} parent=79 // pred_fallthru
          _
        %s2143 = sand.u32 %s402, 1
        %s2144 = scalar_lea.sflag [#allocation8], %s2143
        %s2145 = sand.u32 %s402, 1
        %s2146 = smul.addr %s2145, 16
        %s2147 = scalar_lea.vmem [#allocation18], %s2146
        // Predicated region
        $region117: #{tpu_custom_call.1} parent=79 // pred_check
          %p2148 = pneg %p412
        $region118: #{tpu_custom_call.1} parent=79 // pred_check_branch
          %2150 = sbr.rel (%p2148) target = $region120
        $region119: #{tpu_custom_call.1} parent=79 // pred_region
          %s2151 = smul.u32 2, %s43
          %s2153 = ssub.s32 256, 256
          %2154 = vsyncadd %s2144, %s2153
          %s2155 = smul.addr %s42, 4
          %s2156 = sadd.s32 %s2151, %s2155
          %s2157 = smul.addr %s2156, 128
          %s2158 = scalar_lea.hbm %s15, %s2157
          %s2159 = sshll.u32 %s2147, 4
          %s2160 = int_to_ptr.vmem [resolvable:$true] %s2159
          %2165 = dma.vmem_to_hbm [thread:$0]  %s2160, 256, %s2158, %s2144, 128, 128, 8
        $region120: #{tpu_custom_call.1} parent=79 // pred_fallthru
          _
      $region80: #{tpu_custom_call.1} parent=5 // pred_fallthru
        _
      %p2166 = scmp.le.s32.totalorder 2, %s32
      // Predicated region
      $region121: #{tpu_custom_call.1} parent=5 // pred_check
        %p2167 = pneg %p2166
      $region122: #{tpu_custom_call.1} parent=5 // pred_check_branch
        %2169 = sbr.rel (%p2167) target = $region124
      $region123: #{tpu_custom_call.1} parent=5 // pred_region
        %s2170 = ssub.s32 %s32, 2
        // Predicated region
        $region125: #{tpu_custom_call.1} parent=123 // pred_check
          %p2171 = pneg %p418
        $region126: #{tpu_custom_call.1} parent=123 // pred_check_branch
          %2173 = sbr.rel (%p2171) target = $region128
        $region127: #{tpu_custom_call.1} parent=123 // pred_region
          %s2174 = sand.u32 %s403, 1
          %s2175 = scalar_lea.sflag [#allocation8], %s2174
          %s2176 = sand.u32 %s403, 1
          %s2177 = smul.addr %s2176, 16
          %s2178 = scalar_lea.vmem [#allocation18], %s2177
          %2179 = dma.done %s2175, 256
        $region128: #{tpu_custom_call.1} parent=123 // pred_fallthru
          _
      $region124: #{tpu_custom_call.1} parent=5 // pred_fallthru
        _
    $region6: #{tpu_custom_call.1} parent=1 // loop_footer
      %s36 = sadd.s32 1, %s32
    $region7: #{tpu_custom_call.1} parent=1 // loop_footer_branch
      %31 = sbr.rel target = $region3
    $region8: #{tpu_custom_call.1} parent=1 // loop_exit
      _
    %2180 = vsyncpa [#allocation7], 1
    %s2181 = scalar_lea.sflag [#allocation7], 1
    %2182 = vsyncpa %s2181, 1
    %2183 = vsyncpa [#allocation10], 1
    %s2184 = scalar_lea.sflag [#allocation10], 1
    %2185 = vsyncpa %s2184, 1
    %2186 = vsyncpa [#allocation13], 1
    %2187 = vsyncpa [#allocation16], 1
    %2188 = vsyncpa [#allocation8], 1
    %s2189 = scalar_lea.sflag [#allocation8], 1
    %2190 = vsyncpa %s2189, 1

</llo_original>
